<compile_context>
chip_gen: v7x
topology: tpu7x:2x2x1
jax: 0.10.0
libtpu: 0.0.40
codegen_flags: <defaults>
</compile_context>

<pallas_src>
import jax
import jax.numpy as jnp
from jax.experimental import pallas as pl
from jax.experimental.pallas import tpu as pltpu

LANE = 128
SUB = 8


def _round_up(x, m):
    return (x + m - 1) // m * m


def _pad2d(a, rows, cols):
    r, c = a.shape
    return jnp.pad(a, ((0, rows - r), (0, cols - c)))


def _full_spec(shape):
    nd = len(shape)
    return pl.BlockSpec(shape, lambda i, _nd=nd: (0,) * _nd)


# ---------------------------------------------------------------------------
# Fused kernel: all layers, all edge types, cross-etype sum, ReLU, output head
# (graph structure / layer count are static Python metadata baked at trace time)
# ---------------------------------------------------------------------------
def _make_fused_kernel(ntypes, canonical_etypes, in_etypes, n_layers, out_ntype):
    def kernel(*refs):
        # ---- unpack refs (same order the wrapper builds them) ------------
        idx = 0
        x = {}
        for nt in ntypes:                      # f32 (N_pad, HP) node features
            x[nt] = refs[idx][...]
            idx += 1
        adj = []
        for _ in canonical_etypes:             # bf16 (N_dst_pad, N_src_pad), mean-normalized
            adj.append(refs[idx][...])
            idx += 1
        wcat, bsum = [], []
        for _l in range(n_layers):
            wl, bl = {}, {}
            for d in ntypes:
                if in_etypes[d]:
                    wl[d] = refs[idx][...]     # bf16 ((k+1)*HP, HP) merged weights
                    idx += 1
                    bl[d] = refs[idx][...]     # f32 (1, HP) summed bias
                    idx += 1
            wcat.append(wl)
            bsum.append(bl)
        w_out = refs[idx][...]; idx += 1       # bf16 (HP, OP)
        b_out = refs[idx][...]; idx += 1       # f32 (1, OP)
        out_refs = {nt: refs[idx + i] for i, nt in enumerate(ntypes)}

        # ---- layers: mean aggregation + merged linear + 'sum' + ReLU ------
        for l in range(n_layers):
            new_x = {}
            for d in ntypes:
                eidxs = in_etypes[d]
                if not eidxs:
                    # TODO(synk): node type with no incoming edge type: DGL would drop
                    # it from the output dict; we pass its features through unchanged.
                    new_x[d] = x[d]
                    continue
                segs = []
                for ei in eidxs:
                    s = canonical_etypes[ei][0]
                    agg = jnp.dot(adj[ei], x[s].astype(jnp.bfloat16),
                                  preferred_element_type=jnp.float32)
                    segs.append(agg.astype(jnp.bfloat16))
                segs.append(x[d].astype(jnp.bfloat16))
                cat = jnp.concatenate(segs, axis=-1)          # (N_d, (k+1)*HP) bf16
                contrib = jnp.dot(cat, wcat[l][d],
                                  preferred_element_type=jnp.float32) + bsum[l][d]
                new_x[d] = jnp.maximum(contrib, 0.0)          # f32 epilogue
            x = new_x

        # ---- output head: feats['S'] = sigmoid(feats['S'] @ W_out + b) ----
        y = jnp.dot(x[out_ntype].astype(jnp.bfloat16), w_out,
                    preferred_element_type=jnp.float32) + b_out
        for nt in ntypes:
            if nt == out_ntype:
                out_refs[nt][...] = jax.nn.sigmoid(y)
            else:
                out_refs[nt][...] = x[nt]

    return kernel


# ---------------------------------------------------------------------------
# Wrapper: host-side weight merging / lane-dense padding, single pallas_call
# ---------------------------------------------------------------------------
def hsage_forward(canonical_etypes, adjs, feats, params, out_ntype="S"):
    ntypes = sorted(feats.keys())
    first_e = canonical_etypes[0][1]
    h_dim = params["layers"][0][first_e]["w_self"].shape[0]
    out_dim = params["out_w"].shape[1]
    n_layers = len(params["layers"])
    HP = _round_up(h_dim, LANE)
    OP = _round_up(out_dim, LANE)
    n_pad = {nt: _round_up(feats[nt].shape[0], SUB) for nt in ntypes}

    # incoming edge types per destination node type (static structure)
    in_etypes = {nt: [i for i, (_s, _e, d) in enumerate(canonical_etypes) if d == nt]
                 for nt in ntypes}

    inputs, in_specs = [], []

    # node features, zero-padded to lane-dense (N_pad, 128) f32
    for nt in ntypes:
        xp = _pad2d(feats[nt].astype(jnp.float32), n_pad[nt], HP)
        inputs.append(xp); in_specs.append(_full_spec(xp.shape))

    # mean-normalized adjacency, bf16 for the MXU
    for (s, e, d) in canonical_etypes:
        ap = _pad2d(adjs[(s, e, d)].astype(jnp.float32), n_pad[d], n_pad[s]).astype(jnp.bfloat16)
        inputs.append(ap); in_specs.append(_full_spec(ap.shape))

    # merged per-layer / per-dst-type weights:
    #   W_cat = [W_neigh_e1 ; ... ; W_neigh_ek ; sum_e W_self_e]   (K = (k+1)*HP)
    #   b_sum = sum_e bias_e
    for lp in params["layers"]:
        for d in ntypes:
            eidxs = in_etypes[d]
            if not eidxs:
                continue
            blocks = []
            w_self_sum = jnp.zeros((h_dim, h_dim), jnp.float32)
            b_sum = jnp.zeros((h_dim,), jnp.float32)
            for ei in eidxs:
                e = canonical_etypes[ei][1]
                blocks.append(_pad2d(lp[e]["w_neigh"].astype(jnp.float32), HP, HP))
                w_self_sum = w_self_sum + lp[e]["w_self"]
                b_sum = b_sum + lp[e]["bias"]
            blocks.append(_pad2d(w_self_sum, HP, HP))
            w_cat = jnp.concatenate(blocks, axis=0).astype(jnp.bfloat16)
            b_pad = _pad2d(b_sum.reshape(1, -1), 1, HP)
            inputs.append(w_cat); in_specs.append(_full_spec(w_cat.shape))
            inputs.append(b_pad); in_specs.append(_full_spec(b_pad.shape))

    w_out = _pad2d(params["out_w"].astype(jnp.float32), HP, OP).astype(jnp.bfloat16)
    b_out = _pad2d(params["out_b"].reshape(1, -1).astype(jnp.float32), 1, OP)
    inputs.append(w_out); in_specs.append(_full_spec(w_out.shape))
    inputs.append(b_out); in_specs.append(_full_spec(b_out.shape))

    out_shapes, out_specs = [], []
    for nt in ntypes:
        cols = OP if nt == out_ntype else HP
        shp = (n_pad[nt], cols)
        out_shapes.append(jax.ShapeDtypeStruct(shp, jnp.float32))
        out_specs.append(_full_spec(shp))

    kernel = _make_fused_kernel(ntypes, canonical_etypes, in_etypes, n_layers, out_ntype)

    res = pl.pallas_call(
        kernel,
        out_shape=tuple(out_shapes),
        grid=(1,),
        in_specs=in_specs,
        out_specs=tuple(out_specs),
        compiler_params=pltpu.CompilerParams(dimension_semantics=("arbitrary",)),
    )(*inputs)

    out = {}
    for i, nt in enumerate(ntypes):
        n = feats[nt].shape[0]
        if nt == out_ntype:
            out[nt] = res[i][:n, :out_dim]
        else:
            out[nt] = res[i][:n, :h_dim]
    return out


# ---------------------------------------------------------------------------
# Pure-JAX reference (f32) for a sanity check
# ---------------------------------------------------------------------------
def _ref_forward(canonical_etypes, adjs, feats, params, out_ntype="S"):
    fx = dict(feats)
    for lp in params["layers"]:
        contrib = {nt: None for nt in fx}
        for (s, e, d) in canonical_etypes:
            p = lp[e]
            h_neigh = adjs[(s, e, d)] @ fx[s]
            c = h_neigh @ p["w_neigh"] + fx[d] @ p["w_self"] + p["bias"]
            contrib[d] = c if contrib[d] is None else contrib[d] + c
        fx = {nt: (jnp.maximum(c, 0.0) if c is not None else fx[nt])
              for nt, c in contrib.items()}
    out = dict(fx)
    out[out_ntype] = jax.nn.sigmoid(fx[out_ntype] @ params["out_w"] + params["out_b"])
    return out


if __name__ == "__main__":
    key = jax.random.PRNGKey(0)
    h_dim, out_dim, n_layers = 32, 8, 2
    n_nodes = {"S": 16, "T": 24}
    canonical_etypes = [("S", "rel_ss", "S"), ("S", "rel_st", "T"), ("T", "rel_ts", "S")]

    keys = iter(jax.random.split(key, 64))

    # dense adjacency per edge type, mean (destination-degree) normalized
    adjs = {}
    for (s, e, d) in canonical_etypes:
        a = (jax.random.uniform(next(keys), (n_nodes[d], n_nodes[s])) < 0.35).astype(jnp.float32)
        deg = jnp.maximum(a.sum(axis=1, keepdims=True), 1.0)
        adjs[(s, e, d)] = a / deg

    # input node features (already h_dim-dimensional, as the layers consume them)
    feats = {
        nt: jax.random.normal(next(keys), (n, h_dim), dtype=jnp.float32)
        for nt, n in n_nodes.items()
    }

    # deterministic parameter init (xavier-uniform style)
    def init_lin(k, di, do):
        lim = (6.0 / (di + do)) ** 0.5
        return jax.random.uniform(k, (di, do), minval=-lim, maxval=lim, dtype=jnp.float32)

    layer_list = []
    for _ in range(n_layers):
        lp = {}
        for (_, e, _) in canonical_etypes:
            lp[e] = {
                "w_self": init_lin(next(keys), h_dim, h_dim),
                "w_neigh": init_lin(next(keys), h_dim, h_dim),
                "bias": jnp.zeros((h_dim,), jnp.float32),
            }
        layer_list.append(lp)

    params = {
        "layers": layer_list,
        "out_w": init_lin(next(keys), h_dim, out_dim),  # stored (in, out); x @ W == torch x @ W.T
        "out_b": jnp.zeros((out_dim,), jnp.float32),
    }

    out = hsage_forward(canonical_etypes, adjs, feats, params)
    for leaf in jax.tree_util.tree_leaves(out):
        jax.block_until_ready(leaf)

    assert out["S"].shape == (n_nodes["S"], out_dim)
    assert out["T"].shape == (n_nodes["T"], h_dim)

    # numerical sanity check vs. pure-JAX f32 reference (loose tolerance: bf16 MXU inputs)
    ref = _ref_forward(canonical_etypes, adjs, feats, params)
    for nt in out:
        assert jnp.allclose(out[nt], ref[nt], rtol=5e-2, atol=1.5e-1), nt

    print("KERNEL_OK")
</pallas_src>

<mosaic_0001>
module attributes {stable_mosaic.version = 11 : i64} {
  func.func @kernel(%arg0: i32, %arg1: memref<16x128xf32, #tpu.memory_space<vmem>>, %arg2: memref<24x128xf32, #tpu.memory_space<vmem>>, %arg3: memref<16x16xbf16, #tpu.memory_space<vmem>>, %arg4: memref<24x16xbf16, #tpu.memory_space<vmem>>, %arg5: memref<16x24xbf16, #tpu.memory_space<vmem>>, %arg6: memref<384x128xbf16, #tpu.memory_space<vmem>>, %arg7: memref<1x128xf32, #tpu.memory_space<vmem>>, %arg8: memref<256x128xbf16, #tpu.memory_space<vmem>>, %arg9: memref<1x128xf32, #tpu.memory_space<vmem>>, %arg10: memref<384x128xbf16, #tpu.memory_space<vmem>>, %arg11: memref<1x128xf32, #tpu.memory_space<vmem>>, %arg12: memref<256x128xbf16, #tpu.memory_space<vmem>>, %arg13: memref<1x128xf32, #tpu.memory_space<vmem>>, %arg14: memref<128x128xbf16, #tpu.memory_space<vmem>>, %arg15: memref<1x128xf32, #tpu.memory_space<vmem>>, %arg16: memref<16x128xf32, #tpu.memory_space<vmem>>, %arg17: memref<24x128xf32, #tpu.memory_space<vmem>>) attributes {dimension_semantics = [#tpu.dimension_semantics<arbitrary>], iteration_bounds = array<i64: 1>, scalar_prefetch = 0 : i64, scratch_operands = 0 : i64, tpu.core_type = #tpu.core_type<tc>, window_params = [{pipeline_mode = #tpu.pipeline_mode<synchronous>, transform_indices = @transform_0, window_bounds = array<i64: 16, 128>}, {pipeline_mode = #tpu.pipeline_mode<synchronous>, transform_indices = @transform_1, window_bounds = array<i64: 24, 128>}, {pipeline_mode = #tpu.pipeline_mode<synchronous>, transform_indices = @transform_2, window_bounds = array<i64: 16, 16>}, {pipeline_mode = #tpu.pipeline_mode<synchronous>, transform_indices = @transform_3, window_bounds = array<i64: 24, 16>}, {pipeline_mode = #tpu.pipeline_mode<synchronous>, transform_indices = @transform_4, window_bounds = array<i64: 16, 24>}, {pipeline_mode = #tpu.pipeline_mode<synchronous>, transform_indices = @transform_5, window_bounds = array<i64: 384, 128>}, {pipeline_mode = #tpu.pipeline_mode<synchronous>, transform_indices = @transform_6, window_bounds = array<i64: 1, 128>}, {pipeline_mode = #tpu.pipeline_mode<synchronous>, transform_indices = @transform_7, window_bounds = array<i64: 256, 128>}, {pipeline_mode = #tpu.pipeline_mode<synchronous>, transform_indices = @transform_8, window_bounds = array<i64: 1, 128>}, {pipeline_mode = #tpu.pipeline_mode<synchronous>, transform_indices = @transform_9, window_bounds = array<i64: 384, 128>}, {pipeline_mode = #tpu.pipeline_mode<synchronous>, transform_indices = @transform_10, window_bounds = array<i64: 1, 128>}, {pipeline_mode = #tpu.pipeline_mode<synchronous>, transform_indices = @transform_11, window_bounds = array<i64: 256, 128>}, {pipeline_mode = #tpu.pipeline_mode<synchronous>, transform_indices = @transform_12, window_bounds = array<i64: 1, 128>}, {pipeline_mode = #tpu.pipeline_mode<synchronous>, transform_indices = @transform_13, window_bounds = array<i64: 128, 128>}, {pipeline_mode = #tpu.pipeline_mode<synchronous>, transform_indices = @transform_14, window_bounds = array<i64: 1, 128>}, {pipeline_mode = #tpu.pipeline_mode<synchronous>, transform_indices = @transform_15, window_bounds = array<i64: 16, 128>}, {pipeline_mode = #tpu.pipeline_mode<synchronous>, transform_indices = @transform_16, window_bounds = array<i64: 24, 128>}]} {
    %c0 = arith.constant 0 : index
    %c0_0 = arith.constant 0 : index
    %0 = vector.load %arg1[%c0, %c0_0] : memref<16x128xf32, #tpu.memory_space<vmem>>, vector<16x128xf32>
    %c0_1 = arith.constant 0 : index
    %c0_2 = arith.constant 0 : index
    %1 = vector.load %arg2[%c0_1, %c0_2] : memref<24x128xf32, #tpu.memory_space<vmem>>, vector<24x128xf32>
    %c0_3 = arith.constant 0 : index
    %c0_4 = arith.constant 0 : index
    %2 = vector.load %arg3[%c0_3, %c0_4] : memref<16x16xbf16, #tpu.memory_space<vmem>>, vector<16x16xbf16>
    %c0_5 = arith.constant 0 : index
    %c0_6 = arith.constant 0 : index
    %3 = vector.load %arg4[%c0_5, %c0_6] : memref<24x16xbf16, #tpu.memory_space<vmem>>, vector<24x16xbf16>
    %c0_7 = arith.constant 0 : index
    %c0_8 = arith.constant 0 : index
    %4 = vector.load %arg5[%c0_7, %c0_8] : memref<16x24xbf16, #tpu.memory_space<vmem>>, vector<16x24xbf16>
    %c0_9 = arith.constant 0 : index
    %c0_10 = arith.constant 0 : index
    %5 = vector.load %arg6[%c0_9, %c0_10] : memref<384x128xbf16, #tpu.memory_space<vmem>>, vector<384x128xbf16>
    %c0_11 = arith.constant 0 : index
    %c0_12 = arith.constant 0 : index
    %6 = vector.load %arg7[%c0_11, %c0_12] : memref<1x128xf32, #tpu.memory_space<vmem>>, vector<1x128xf32>
    %c0_13 = arith.constant 0 : index
    %c0_14 = arith.constant 0 : index
    %7 = vector.load %arg8[%c0_13, %c0_14] : memref<256x128xbf16, #tpu.memory_space<vmem>>, vector<256x128xbf16>
    %c0_15 = arith.constant 0 : index
    %c0_16 = arith.constant 0 : index
    %8 = vector.load %arg9[%c0_15, %c0_16] : memref<1x128xf32, #tpu.memory_space<vmem>>, vector<1x128xf32>
    %c0_17 = arith.constant 0 : index
    %c0_18 = arith.constant 0 : index
    %9 = vector.load %arg10[%c0_17, %c0_18] : memref<384x128xbf16, #tpu.memory_space<vmem>>, vector<384x128xbf16>
    %c0_19 = arith.constant 0 : index
    %c0_20 = arith.constant 0 : index
    %10 = vector.load %arg11[%c0_19, %c0_20] : memref<1x128xf32, #tpu.memory_space<vmem>>, vector<1x128xf32>
    %c0_21 = arith.constant 0 : index
    %c0_22 = arith.constant 0 : index
    %11 = vector.load %arg12[%c0_21, %c0_22] : memref<256x128xbf16, #tpu.memory_space<vmem>>, vector<256x128xbf16>
    %c0_23 = arith.constant 0 : index
    %c0_24 = arith.constant 0 : index
    %12 = vector.load %arg13[%c0_23, %c0_24] : memref<1x128xf32, #tpu.memory_space<vmem>>, vector<1x128xf32>
    %c0_25 = arith.constant 0 : index
    %c0_26 = arith.constant 0 : index
    %13 = vector.load %arg14[%c0_25, %c0_26] : memref<128x128xbf16, #tpu.memory_space<vmem>>, vector<128x128xbf16>
    %c0_27 = arith.constant 0 : index
    %c0_28 = arith.constant 0 : index
    %14 = vector.load %arg15[%c0_27, %c0_28] : memref<1x128xf32, #tpu.memory_space<vmem>>, vector<1x128xf32>
    %15 = arith.truncf %0 : vector<16x128xf32> to vector<16x128xbf16>
    %cst = arith.constant dense<0.000000e+00> : vector<16x128xf32>
    %16 = tpu.matmul %2, %15, %cst {dimension_numbers = #tpu.dot_dimension_numbers<[1], [0], [0], [1], [0, 0, 1, 1], [], []>} : vector<16x16xbf16>, vector<16x128xbf16>, vector<16x128xf32> -> vector<16x128xf32>
    %17 = arith.truncf %16 : vector<16x128xf32> to vector<16x128xbf16>
    %18 = arith.truncf %1 : vector<24x128xf32> to vector<24x128xbf16>
    %cst_29 = arith.constant dense<0.000000e+00> : vector<16x128xf32>
    %19 = tpu.matmul %4, %18, %cst_29 {dimension_numbers = #tpu.dot_dimension_numbers<[1], [0], [0], [1], [0, 0, 1, 1], [], []>} : vector<16x24xbf16>, vector<24x128xbf16>, vector<16x128xf32> -> vector<16x128xf32>
    %20 = arith.truncf %19 : vector<16x128xf32> to vector<16x128xbf16>
    %21 = arith.truncf %0 : vector<16x128xf32> to vector<16x128xbf16>
    %22 = tpu.concatenate %17, %20, %21 in 1 : vector<16x128xbf16>, vector<16x128xbf16>, vector<16x128xbf16> -> vector<16x384xbf16>
    %cst_30 = arith.constant dense<0.000000e+00> : vector<16x128xf32>
    %23 = tpu.matmul %22, %5, %cst_30 {dimension_numbers = #tpu.dot_dimension_numbers<[1], [0], [0], [1], [0, 0, 1, 1], [], []>} : vector<16x384xbf16>, vector<384x128xbf16>, vector<16x128xf32> -> vector<16x128xf32>
    %24 = vector.broadcast %6 : vector<1x128xf32> to vector<16x128xf32>
    %25 = arith.addf %23, %24 : vector<16x128xf32>
    %cst_31 = arith.constant 0.000000e+00 : f32
    %26 = vector.broadcast %cst_31 : f32 to vector<16x128xf32>
    %27 = arith.maximumf %25, %26 : vector<16x128xf32>
    %28 = arith.truncf %0 : vector<16x128xf32> to vector<16x128xbf16>
    %cst_32 = arith.constant dense<0.000000e+00> : vector<24x128xf32>
    %29 = tpu.matmul %3, %28, %cst_32 {dimension_numbers = #tpu.dot_dimension_numbers<[1], [0], [0], [1], [0, 0, 1, 1], [], []>} : vector<24x16xbf16>, vector<16x128xbf16>, vector<24x128xf32> -> vector<24x128xf32>
    %30 = arith.truncf %29 : vector<24x128xf32> to vector<24x128xbf16>
    %31 = arith.truncf %1 : vector<24x128xf32> to vector<24x128xbf16>
    %32 = tpu.concatenate %30, %31 in 1 : vector<24x128xbf16>, vector<24x128xbf16> -> vector<24x256xbf16>
    %cst_33 = arith.constant dense<0.000000e+00> : vector<24x128xf32>
    %33 = tpu.matmul %32, %7, %cst_33 {dimension_numbers = #tpu.dot_dimension_numbers<[1], [0], [0], [1], [0, 0, 1, 1], [], []>} : vector<24x256xbf16>, vector<256x128xbf16>, vector<24x128xf32> -> vector<24x128xf32>
    %34 = vector.broadcast %8 : vector<1x128xf32> to vector<24x128xf32>
    %35 = arith.addf %33, %34 : vector<24x128xf32>
    %cst_34 = arith.constant 0.000000e+00 : f32
    %36 = vector.broadcast %cst_34 : f32 to vector<24x128xf32>
    %37 = arith.maximumf %35, %36 : vector<24x128xf32>
    %38 = arith.truncf %27 : vector<16x128xf32> to vector<16x128xbf16>
    %cst_35 = arith.constant dense<0.000000e+00> : vector<16x128xf32>
    %39 = tpu.matmul %2, %38, %cst_35 {dimension_numbers = #tpu.dot_dimension_numbers<[1], [0], [0], [1], [0, 0, 1, 1], [], []>} : vector<16x16xbf16>, vector<16x128xbf16>, vector<16x128xf32> -> vector<16x128xf32>
    %40 = arith.truncf %39 : vector<16x128xf32> to vector<16x128xbf16>
    %41 = arith.truncf %37 : vector<24x128xf32> to vector<24x128xbf16>
    %cst_36 = arith.constant dense<0.000000e+00> : vector<16x128xf32>
    %42 = tpu.matmul %4, %41, %cst_36 {dimension_numbers = #tpu.dot_dimension_numbers<[1], [0], [0], [1], [0, 0, 1, 1], [], []>} : vector<16x24xbf16>, vector<24x128xbf16>, vector<16x128xf32> -> vector<16x128xf32>
    %43 = arith.truncf %42 : vector<16x128xf32> to vector<16x128xbf16>
    %44 = arith.truncf %27 : vector<16x128xf32> to vector<16x128xbf16>
    %45 = tpu.concatenate %40, %43, %44 in 1 : vector<16x128xbf16>, vector<16x128xbf16>, vector<16x128xbf16> -> vector<16x384xbf16>
    %cst_37 = arith.constant dense<0.000000e+00> : vector<16x128xf32>
    %46 = tpu.matmul %45, %9, %cst_37 {dimension_numbers = #tpu.dot_dimension_numbers<[1], [0], [0], [1], [0, 0, 1, 1], [], []>} : vector<16x384xbf16>, vector<384x128xbf16>, vector<16x128xf32> -> vector<16x128xf32>
    %47 = vector.broadcast %10 : vector<1x128xf32> to vector<16x128xf32>
    %48 = arith.addf %46, %47 : vector<16x128xf32>
    %cst_38 = arith.constant 0.000000e+00 : f32
    %49 = vector.broadcast %cst_38 : f32 to vector<16x128xf32>
    %50 = arith.maximumf %48, %49 : vector<16x128xf32>
    %51 = arith.truncf %27 : vector<16x128xf32> to vector<16x128xbf16>
    %cst_39 = arith.constant dense<0.000000e+00> : vector<24x128xf32>
    %52 = tpu.matmul %3, %51, %cst_39 {dimension_numbers = #tpu.dot_dimension_numbers<[1], [0], [0], [1], [0, 0, 1, 1], [], []>} : vector<24x16xbf16>, vector<16x128xbf16>, vector<24x128xf32> -> vector<24x128xf32>
    %53 = arith.truncf %52 : vector<24x128xf32> to vector<24x128xbf16>
    %54 = arith.truncf %37 : vector<24x128xf32> to vector<24x128xbf16>
    %55 = tpu.concatenate %53, %54 in 1 : vector<24x128xbf16>, vector<24x128xbf16> -> vector<24x256xbf16>
    %cst_40 = arith.constant dense<0.000000e+00> : vector<24x128xf32>
    %56 = tpu.matmul %55, %11, %cst_40 {dimension_numbers = #tpu.dot_dimension_numbers<[1], [0], [0], [1], [0, 0, 1, 1], [], []>} : vector<24x256xbf16>, vector<256x128xbf16>, vector<24x128xf32> -> vector<24x128xf32>
    %57 = vector.broadcast %12 : vector<1x128xf32> to vector<24x128xf32>
    %58 = arith.addf %56, %57 : vector<24x128xf32>
    %cst_41 = arith.constant 0.000000e+00 : f32
    %59 = vector.broadcast %cst_41 : f32 to vector<24x128xf32>
    %60 = arith.maximumf %58, %59 : vector<24x128xf32>
    %61 = arith.truncf %50 : vector<16x128xf32> to vector<16x128xbf16>
    %cst_42 = arith.constant dense<0.000000e+00> : vector<16x128xf32>
    %62 = tpu.matmul %61, %13, %cst_42 {dimension_numbers = #tpu.dot_dimension_numbers<[1], [0], [0], [1], [0, 0, 1, 1], [], []>} : vector<16x128xbf16>, vector<128x128xbf16>, vector<16x128xf32> -> vector<16x128xf32>
    %63 = vector.broadcast %14 : vector<1x128xf32> to vector<16x128xf32>
    %64 = arith.addf %62, %63 : vector<16x128xf32>
    %65 = arith.negf %64 : vector<16x128xf32>
    %66 = math.exp %65 : vector<16x128xf32>
    %cst_43 = arith.constant 1.000000e+00 : f32
    %67 = vector.broadcast %cst_43 : f32 to vector<16x128xf32>
    %68 = arith.addf %67, %66 : vector<16x128xf32>
    %69 = arith.divf %67, %68 : vector<16x128xf32>
    %c0_44 = arith.constant 0 : index
    %c0_45 = arith.constant 0 : index
    %70 = vector.load %arg16[%c0_44, %c0_45] : memref<16x128xf32, #tpu.memory_space<vmem>>, vector<16x128xf32>
    tpu.vector_store %arg16[%c0_44, %c0_45], %69 {strides = array<i32>} : memref<16x128xf32, #tpu.memory_space<vmem>>, vector<16x128xf32>,
    %c0_46 = arith.constant 0 : index
    %c0_47 = arith.constant 0 : index
    %71 = vector.load %arg17[%c0_46, %c0_47] : memref<24x128xf32, #tpu.memory_space<vmem>>, vector<24x128xf32>
    tpu.vector_store %arg17[%c0_46, %c0_47], %60 {strides = array<i32>} : memref<24x128xf32, #tpu.memory_space<vmem>>, vector<24x128xf32>,
    return
  }
  func.func @transform_0(%arg0: i32) -> (i32, i32) {
    %c0_i32 = arith.constant 0 : i32
    %c0_i32_0 = arith.constant 0 : i32
    %c0_i32_1 = arith.constant 0 : i32
    return %c0_i32, %c0_i32_0 : i32, i32
  }
  func.func @transform_1(%arg0: i32) -> (i32, i32) {
    %c0_i32 = arith.constant 0 : i32
    %c0_i32_0 = arith.constant 0 : i32
    %c0_i32_1 = arith.constant 0 : i32
    return %c0_i32, %c0_i32_0 : i32, i32
  }
  func.func @transform_2(%arg0: i32) -> (i32, i32) {
    %c0_i32 = arith.constant 0 : i32
    %c0_i32_0 = arith.constant 0 : i32
    %c0_i32_1 = arith.constant 0 : i32
    return %c0_i32, %c0_i32_0 : i32, i32
  }
  func.func @transform_3(%arg0: i32) -> (i32, i32) {
    %c0_i32 = arith.constant 0 : i32
    %c0_i32_0 = arith.constant 0 : i32
    %c0_i32_1 = arith.constant 0 : i32
    return %c0_i32, %c0_i32_0 : i32, i32
  }
  func.func @transform_4(%arg0: i32) -> (i32, i32) {
    %c0_i32 = arith.constant 0 : i32
    %c0_i32_0 = arith.constant 0 : i32
    %c0_i32_1 = arith.constant 0 : i32
    return %c0_i32, %c0_i32_0 : i32, i32
  }
  func.func @transform_5(%arg0: i32) -> (i32, i32) {
    %c0_i32 = arith.constant 0 : i32
    %c0_i32_0 = arith.constant 0 : i32
    %c0_i32_1 = arith.constant 0 : i32
    return %c0_i32, %c0_i32_0 : i32, i32
  }
  func.func @transform_6(%arg0: i32) -> (i32, i32) {
    %c0_i32 = arith.constant 0 : i32
    %c0_i32_0 = arith.constant 0 : i32
    %c0_i32_1 = arith.constant 0 : i32
    return %c0_i32, %c0_i32_0 : i32, i32
  }
  func.func @transform_7(%arg0: i32) -> (i32, i32) {
    %c0_i32 = arith.constant 0 : i32
    %c0_i32_0 = arith.constant 0 : i32
    %c0_i32_1 = arith.constant 0 : i32
    return %c0_i32, %c0_i32_0 : i32, i32
  }
  func.func @transform_8(%arg0: i32) -> (i32, i32) {
    %c0_i32 = arith.constant 0 : i32
    %c0_i32_0 = arith.constant 0 : i32
    %c0_i32_1 = arith.constant 0 : i32
    return %c0_i32, %c0_i32_0 : i32, i32
  }
  func.func @transform_9(%arg0: i32) -> (i32, i32) {
    %c0_i32 = arith.constant 0 : i32
    %c0_i32_0 = arith.constant 0 : i32
    %c0_i32_1 = arith.constant 0 : i32
    return %c0_i32, %c0_i32_0 : i32, i32
  }
  func.func @transform_10(%arg0: i32) -> (i32, i32) {
    %c0_i32 = arith.constant 0 : i32
    %c0_i32_0 = arith.constant 0 : i32
    %c0_i32_1 = arith.constant 0 : i32
    return %c0_i32, %c0_i32_0 : i32, i32
  }
  func.func @transform_11(%arg0: i32) -> (i32, i32) {
    %c0_i32 = arith.constant 0 : i32
    %c0_i32_0 = arith.constant 0 : i32
    %c0_i32_1 = arith.constant 0 : i32
    return %c0_i32, %c0_i32_0 : i32, i32
  }
  func.func @transform_12(%arg0: i32) -> (i32, i32) {
    %c0_i32 = arith.constant 0 : i32
    %c0_i32_0 = arith.constant 0 : i32
    %c0_i32_1 = arith.constant 0 : i32
    return %c0_i32, %c0_i32_0 : i32, i32
  }
  func.func @transform_13(%arg0: i32) -> (i32, i32) {
    %c0_i32 = arith.constant 0 : i32
    %c0_i32_0 = arith.constant 0 : i32
    %c0_i32_1 = arith.constant 0 : i32
    return %c0_i32, %c0_i32_0 : i32, i32
  }
  func.func @transform_14(%arg0: i32) -> (i32, i32) {
    %c0_i32 = arith.constant 0 : i32
    %c0_i32_0 = arith.constant 0 : i32
    %c0_i32_1 = arith.constant 0 : i32
    return %c0_i32, %c0_i32_0 : i32, i32
  }
  func.func @transform_15(%arg0: i32) -> (i32, i32) {
    %c0_i32 = arith.constant 0 : i32
    %c0_i32_0 = arith.constant 0 : i32
    %c0_i32_1 = arith.constant 0 : i32
    return %c0_i32, %c0_i32_0 : i32, i32
  }
  func.func @transform_16(%arg0: i32) -> (i32, i32) {
    %c0_i32 = arith.constant 0 : i32
    %c0_i32_0 = arith.constant 0 : i32
    %c0_i32_1 = arith.constant 0 : i32
    return %c0_i32, %c0_i32_0 : i32, i32
  }
}

</mosaic_0001>

<llo_original>
// kernel: tpu_custom_call.1
$region0: #{tpu_custom_call.1}
  #allocation0 [shape = 'u32[]', space=smem, size = 0x4, offset = 0x4, fixed_abs, tag = 'smem constant byte address 0x4 - core index']
  #allocation1 [shape = 'u32[144,128]{1,0:T(1,128)}', space=vmem, size = 0x12000, scoped, tag = 'internal scratch']
  %s0 = inlined_call_operand.hbm [shape: f32[16,128], index: 0, kind: input, shape index: {}]
  %s1 = inlined_call_operand.hbm [shape: f32[24,128], index: 1, kind: input, shape index: {}]
  %s2 = inlined_call_operand.hbm [shape: bf16[16,16], index: 2, kind: input, shape index: {}]
  %s3 = inlined_call_operand.vmem [shape: bf16[24,16], index: 3, kind: input, shape index: {}]
  %s4 = inlined_call_operand.hbm [shape: bf16[16,24], index: 4, kind: input, shape index: {}]
  %s5 = inlined_call_operand.hbm [shape: bf16[384,128], index: 5, kind: input, shape index: {}]
  %s6 = inlined_call_operand.vmem [shape: f32[1,128], index: 6, kind: input, shape index: {}]
  %s7 = inlined_call_operand.hbm [shape: bf16[256,128], index: 7, kind: input, shape index: {}]
  %s8 = inlined_call_operand.vmem [shape: f32[1,128], index: 8, kind: input, shape index: {}]
  %s9 = inlined_call_operand.hbm [shape: bf16[384,128], index: 9, kind: input, shape index: {}]
  %s10 = inlined_call_operand.vmem [shape: f32[1,128], index: 10, kind: input, shape index: {}]
  %s11 = inlined_call_operand.hbm [shape: bf16[256,128], index: 11, kind: input, shape index: {}]
  %s12 = inlined_call_operand.vmem [shape: f32[1,128], index: 12, kind: input, shape index: {}]
  %s13 = inlined_call_operand.vmem [shape: bf16[128,128], index: 13, kind: input, shape index: {}]
  %s14 = inlined_call_operand.vmem [shape: f32[1,128], index: 14, kind: input, shape index: {}]
  %s15 = inlined_call_operand.hbm [shape: f32[16,128], index: 15, kind: output, shape index: {0}]
  %s16 = inlined_call_operand.hbm [shape: f32[24,128], index: 16, kind: output, shape index: {1}]
  %17 = xla_tuple %s15, %s16
  %s18 = sld [smem:[#allocation0]]
  $region110: #{tpu_custom_call.1} parent=0
    _
  %s20 = ssub.s32 1, %s18
  %s21 = scalar_select 0, %s20, %s18
  $region1: #{tpu_custom_call.1} parent=0
    #allocation2 [shape = 'u8[8192]{0}', space=vmem, size = 0x2000, scoped, tag = 'input window, operand 0, single buffered']
    #allocation3 [shape = 's32[1]{0}', space=sflag, size = 0x4, scoped, tag = 'scoped memory for tpu_custom_call.1']
    #allocation4 [shape = 's32[1]{0}', space=sflag, size = 0x4, scoped, tag = 'scoped memory for tpu_custom_call.1']
    #allocation5 [shape = 'u8[12288]{0}', space=vmem, size = 0x3000, scoped, tag = 'input window, operand 1, single buffered']
    #allocation6 [shape = 's32[1]{0}', space=sflag, size = 0x4, scoped, tag = 'scoped memory for tpu_custom_call.1']
    #allocation7 [shape = 'u8[4096]{0}', space=vmem, size = 0x1000, scoped, tag = 'input window, operand 2, single buffered']
    #allocation8 [shape = 'u8[4096]{0}', space=vmem, size = 0x1000, scoped, tag = 'input window, operand 4, single buffered']
    #allocation9 [shape = 's32[1]{0}', space=sflag, size = 0x4, scoped, tag = 'scoped memory for tpu_custom_call.1']
    #allocation10 [shape = 'u8[98304]{0}', space=vmem, size = 0x18000, scoped, tag = 'input window, operand 5, single buffered']
    #allocation11 [shape = 'u8[65536]{0}', space=vmem, size = 0x10000, scoped, tag = 'input window, operand 7, single buffered']
    #allocation12 [shape = 's32[1]{0}', space=sflag, size = 0x4, scoped, tag = 'scoped memory for tpu_custom_call.1']
    #allocation13 [shape = 'u8[98304]{0}', space=vmem, size = 0x18000, scoped, tag = 'input window, operand 9, single buffered']
    #allocation14 [shape = 'u8[65536]{0}', space=vmem, size = 0x10000, scoped, tag = 'input window, operand 11, single buffered']
    #allocation15 [shape = 's32[1]{0}', space=sflag, size = 0x4, scoped, tag = 'scoped memory for tpu_custom_call.1']
    #allocation16 [shape = 'u8[8192]{0}', space=vmem, size = 0x2000, scoped, tag = 'output window, operand 0, single buffered']
    #allocation17 [shape = 'u8[12288]{0}', space=vmem, size = 0x3000, scoped, tag = 'output window, operand 1, single buffered']
    #allocation18 [shape = 's32[1]{0}', space=sflag, size = 0x4, scoped, tag = 'scoped memory for tpu_custom_call.1']
    %22 = vsyncpa [#allocation3], 0
    %23 = vsyncpa [#allocation6], 0
    %24 = vsyncpa [#allocation9], 0
    %25 = vsyncpa [#allocation12], 0
    %26 = vsyncpa [#allocation15], 0
    %27 = vsyncpa [#allocation4], 0
    %28 = vsyncpa [#allocation18], 0
    // Predicated region
    $region2: #{tpu_custom_call.1} parent=1 // pred_check
      _
    $region3: #{tpu_custom_call.1} parent=1 // pred_check_branch
      %30 = sbr.rel (0) target = $region5
    $region4: #{tpu_custom_call.1} parent=1 // pred_region
      %s32 = ssub.s32 256, 256
      %33 = vsyncadd [#allocation3], %s32
      %s34 = sshll.u32 [#allocation2], 4
      %s35 = int_to_ptr.vmem [resolvable:$true] %s34
      %40 = dma.hbm_to_vmem [thread:$0]  %s0, 256, %s35, [#allocation3], 128, 128, 8
    $region5: #{tpu_custom_call.1} parent=1 // pred_fallthru
      _
    // Predicated region
    $region6: #{tpu_custom_call.1} parent=1 // pred_check
      _
    $region7: #{tpu_custom_call.1} parent=1 // pred_check_branch
      %42 = sbr.rel (0) target = $region9
    $region8: #{tpu_custom_call.1} parent=1 // pred_region
      %s44 = ssub.s32 384, 384
      %45 = vsyncadd [#allocation6], %s44
      %s46 = sshll.u32 [#allocation5], 4
      %s47 = int_to_ptr.vmem [resolvable:$true] %s46
      %52 = dma.hbm_to_vmem [thread:$0]  %s1, 384, %s47, [#allocation6], 128, 128, 8
    $region9: #{tpu_custom_call.1} parent=1 // pred_fallthru
      _
    // Predicated region
    $region10: #{tpu_custom_call.1} parent=1 // pred_check
      _
    $region11: #{tpu_custom_call.1} parent=1 // pred_check_branch
      %54 = sbr.rel (0) target = $region13
    $region12: #{tpu_custom_call.1} parent=1 // pred_region
      %s56 = ssub.s32 128, 128
      %57 = vsyncadd [#allocation6], %s56
      %s58 = sshll.u32 [#allocation7], 4
      %s59 = int_to_ptr.vmem [resolvable:$true] %s58
      %64 = dma.hbm_to_vmem [thread:$0]  %s2, 128, %s59, [#allocation6], 64, 64, 4
    $region13: #{tpu_custom_call.1} parent=1 // pred_fallthru
      _
    // Predicated region
    $region14: #{tpu_custom_call.1} parent=1 // pred_check
      _
    $region15: #{tpu_custom_call.1} parent=1 // pred_check_branch
      %66 = sbr.rel (0) target = $region17
    $region16: #{tpu_custom_call.1} parent=1 // pred_region
      _
    $region17: #{tpu_custom_call.1} parent=1 // pred_fallthru
      _
    // Predicated region
    $region18: #{tpu_custom_call.1} parent=1 // pred_check
      _
    $region19: #{tpu_custom_call.1} parent=1 // pred_check_branch
      %68 = sbr.rel (0) target = $region21
    $region20: #{tpu_custom_call.1} parent=1 // pred_region
      %s70 = ssub.s32 128, 128
      %71 = vsyncadd [#allocation9], %s70
      %s72 = sshll.u32 [#allocation8], 4
      %s73 = int_to_ptr.vmem [resolvable:$true] %s72
      %78 = dma.hbm_to_vmem [thread:$0]  %s4, 128, %s73, [#allocation9], 64, 64, 4
    $region21: #{tpu_custom_call.1} parent=1 // pred_fallthru
      _
    // Predicated region
    $region22: #{tpu_custom_call.1} parent=1 // pred_check
      _
    $region23: #{tpu_custom_call.1} parent=1 // pred_check_branch
      %80 = sbr.rel (0) target = $region25
    $region24: #{tpu_custom_call.1} parent=1 // pred_region
      %s82 = ssub.s32 3072, 3072
      %83 = vsyncadd [#allocation9], %s82
      %s84 = sshll.u32 [#allocation10], 4
      %s85 = int_to_ptr.vmem [resolvable:$true] %s84
      %90 = dma.hbm_to_vmem [thread:$0]  %s5, 3072, %s85, [#allocation9], 64, 64, 4
    $region25: #{tpu_custom_call.1} parent=1 // pred_fallthru
      _
    // Predicated region
    $region26: #{tpu_custom_call.1} parent=1 // pred_check
      _
    $region27: #{tpu_custom_call.1} parent=1 // pred_check_branch
      %92 = sbr.rel (0) target = $region29
    $region28: #{tpu_custom_call.1} parent=1 // pred_region
      _
    $region29: #{tpu_custom_call.1} parent=1 // pred_fallthru
      _
    // Predicated region
    $region30: #{tpu_custom_call.1} parent=1 // pred_check
      _
    $region31: #{tpu_custom_call.1} parent=1 // pred_check_branch
      %94 = sbr.rel (0) target = $region33
    $region32: #{tpu_custom_call.1} parent=1 // pred_region
      %s96 = ssub.s32 2048, 2048
      %97 = vsyncadd [#allocation12], %s96
      %s98 = sshll.u32 [#allocation11], 4
      %s99 = int_to_ptr.vmem [resolvable:$true] %s98
      %104 = dma.hbm_to_vmem [thread:$0]  %s7, 2048, %s99, [#allocation12], 64, 64, 4
    $region33: #{tpu_custom_call.1} parent=1 // pred_fallthru
      _
    // Predicated region
    $region34: #{tpu_custom_call.1} parent=1 // pred_check
      _
    $region35: #{tpu_custom_call.1} parent=1 // pred_check_branch
      %106 = sbr.rel (0) target = $region37
    $region36: #{tpu_custom_call.1} parent=1 // pred_region
      _
    $region37: #{tpu_custom_call.1} parent=1 // pred_fallthru
      _
    // Predicated region
    $region38: #{tpu_custom_call.1} parent=1 // pred_check
      _
    $region39: #{tpu_custom_call.1} parent=1 // pred_check_branch
      %108 = sbr.rel (0) target = $region41
    $region40: #{tpu_custom_call.1} parent=1 // pred_region
      %s110 = ssub.s32 3072, 3072
      %111 = vsyncadd [#allocation12], %s110
      %s112 = sshll.u32 [#allocation13], 4
      %s113 = int_to_ptr.vmem [resolvable:$true] %s112
      %118 = dma.hbm_to_vmem [thread:$0]  %s9, 3072, %s113, [#allocation12], 64, 64, 4
    $region41: #{tpu_custom_call.1} parent=1 // pred_fallthru
      _
    // Predicated region
    $region42: #{tpu_custom_call.1} parent=1 // pred_check
      _
    $region43: #{tpu_custom_call.1} parent=1 // pred_check_branch
      %120 = sbr.rel (0) target = $region45
    $region44: #{tpu_custom_call.1} parent=1 // pred_region
      _
    $region45: #{tpu_custom_call.1} parent=1 // pred_fallthru
      _
    // Predicated region
    $region46: #{tpu_custom_call.1} parent=1 // pred_check
      _
    $region47: #{tpu_custom_call.1} parent=1 // pred_check_branch
      %122 = sbr.rel (0) target = $region49
    $region48: #{tpu_custom_call.1} parent=1 // pred_region
      %s124 = ssub.s32 2048, 2048
      %125 = vsyncadd [#allocation15], %s124
      %s126 = sshll.u32 [#allocation14], 4
      %s127 = int_to_ptr.vmem [resolvable:$true] %s126
      %132 = dma.hbm_to_vmem [thread:$0]  %s11, 2048, %s127, [#allocation15], 64, 64, 4
    $region49: #{tpu_custom_call.1} parent=1 // pred_fallthru
      _
    // Predicated region
    $region50: #{tpu_custom_call.1} parent=1 // pred_check
      _
    $region51: #{tpu_custom_call.1} parent=1 // pred_check_branch
      %134 = sbr.rel (0) target = $region53
    $region52: #{tpu_custom_call.1} parent=1 // pred_region
      _
    $region53: #{tpu_custom_call.1} parent=1 // pred_fallthru
      _
    // Predicated region
    $region54: #{tpu_custom_call.1} parent=1 // pred_check
      _
    $region55: #{tpu_custom_call.1} parent=1 // pred_check_branch
      %136 = sbr.rel (0) target = $region57
    $region56: #{tpu_custom_call.1} parent=1 // pred_region
      _
    $region57: #{tpu_custom_call.1} parent=1 // pred_fallthru
      _
    // Predicated region
    $region58: #{tpu_custom_call.1} parent=1 // pred_check
      _
    $region59: #{tpu_custom_call.1} parent=1 // pred_check_branch
      %138 = sbr.rel (0) target = $region61
    $region60: #{tpu_custom_call.1} parent=1 // pred_region
      _
    $region61: #{tpu_custom_call.1} parent=1 // pred_fallthru
      _
    // Predicated region
    $region62: #{tpu_custom_call.1} parent=1 // pred_check
      _
    $region63: #{tpu_custom_call.1} parent=1 // pred_check_branch
      %140 = sbr.rel (0) target = $region65
    $region64: #{tpu_custom_call.1} parent=1 // pred_region
      %141 = dma.done [#allocation3], 256
    $region65: #{tpu_custom_call.1} parent=1 // pred_fallthru
      _
    // Predicated region
    $region66: #{tpu_custom_call.1} parent=1 // pred_check
      _
    $region67: #{tpu_custom_call.1} parent=1 // pred_check_branch
      %143 = sbr.rel (0) target = $region69
    $region68: #{tpu_custom_call.1} parent=1 // pred_region
      %144 = dma.done [#allocation6], 384
    $region69: #{tpu_custom_call.1} parent=1 // pred_fallthru
      _
    // Predicated region
    $region70: #{tpu_custom_call.1} parent=1 // pred_check
      _
    $region71: #{tpu_custom_call.1} parent=1 // pred_check_branch
      %146 = sbr.rel (0) target = $region73
    $region72: #{tpu_custom_call.1} parent=1 // pred_region
      %147 = dma.done [#allocation6], 128
    $region73: #{tpu_custom_call.1} parent=1 // pred_fallthru
      _
    // Predicated region
    $region74: #{tpu_custom_call.1} parent=1 // pred_check
      _
    $region75: #{tpu_custom_call.1} parent=1 // pred_check_branch
      %149 = sbr.rel (0) target = $region77
    $region76: #{tpu_custom_call.1} parent=1 // pred_region
      %150 = dma.done [#allocation9], 128
    $region77: #{tpu_custom_call.1} parent=1 // pred_fallthru
      _
    // Predicated region
    $region78: #{tpu_custom_call.1} parent=1 // pred_check
      _
    $region79: #{tpu_custom_call.1} parent=1 // pred_check_branch
      %152 = sbr.rel (0) target = $region81
    $region80: #{tpu_custom_call.1} parent=1 // pred_region
      %153 = dma.done [#allocation9], 3072
    $region81: #{tpu_custom_call.1} parent=1 // pred_fallthru
      _
    // Predicated region
    $region82: #{tpu_custom_call.1} parent=1 // pred_check
      _
    $region83: #{tpu_custom_call.1} parent=1 // pred_check_branch
      %155 = sbr.rel (0) target = $region85
    $region84: #{tpu_custom_call.1} parent=1 // pred_region
      %156 = dma.done [#allocation12], 2048
    $region85: #{tpu_custom_call.1} parent=1 // pred_fallthru
      _
    // Predicated region
    $region86: #{tpu_custom_call.1} parent=1 // pred_check
      _
    $region87: #{tpu_custom_call.1} parent=1 // pred_check_branch
      %158 = sbr.rel (0) target = $region89
    $region88: #{tpu_custom_call.1} parent=1 // pred_region
      %159 = dma.done [#allocation12], 3072
    $region89: #{tpu_custom_call.1} parent=1 // pred_fallthru
      _
    // Predicated region
    $region90: #{tpu_custom_call.1} parent=1 // pred_check
      _
    $region91: #{tpu_custom_call.1} parent=1 // pred_check_branch
      %161 = sbr.rel (0) target = $region93
    $region92: #{tpu_custom_call.1} parent=1 // pred_region
      %162 = dma.done [#allocation15], 2048
    $region93: #{tpu_custom_call.1} parent=1 // pred_fallthru
      _
    %v164 = vld [vmem:[#allocation2] sm:$0xff]
    %v165 = vld [vmem:[#allocation2 + $0x8] sm:$0xff]
    %v166 = vld [vmem:[#allocation5] sm:$0xff]
    %v167 = vld [vmem:[#allocation5 + $0x8] sm:$0xff]
    %v168 = vld [vmem:[#allocation5 + $0x10] sm:$0xff]
    %v169 = vld [vmem:[#allocation7] sm:$0xf]
    %v170 = vld [vmem:[#allocation7 + $0x4] sm:$0xf]
    %v171 = vld [vmem:[%s3] sm:$0xf]
    %v172 = vld [vmem:[%s3 + $0x4] sm:$0xf]
    %v173 = vld [vmem:[%s3 + $0x8] sm:$0xf]
    %v174 = vld [vmem:[#allocation8] sm:$0xf]
    %v175 = vld [vmem:[#allocation8 + $0x4] sm:$0xf]
    %v176 = vld [vmem:[#allocation10] sm:$0xf]
    %v177 = vld [vmem:[#allocation10 + $0x4] sm:$0xf]
    %v178 = vld [vmem:[#allocation10 + $0x8] sm:$0xf]
    %v179 = vld [vmem:[#allocation10 + $0xc] sm:$0xf]
    %v180 = vld [vmem:[#allocation10 + $0x10] sm:$0xf]
    %v181 = vld [vmem:[#allocation10 + $0x14] sm:$0xf]
    %v182 = vld [vmem:[#allocation10 + $0x18] sm:$0xf]
    %v183 = vld [vmem:[#allocation10 + $0x1c] sm:$0xf]
    %v184 = vld [vmem:[#allocation10 + $0x20] sm:$0xf]
    %v185 = vld [vmem:[#allocation10 + $0x24] sm:$0xf]
    %v186 = vld [vmem:[#allocation10 + $0x28] sm:$0xf]
    %v187 = vld [vmem:[#allocation10 + $0x2c] sm:$0xf]
    %v188 = vld [vmem:[#allocation10 + $0x30] sm:$0xf]
    %v189 = vld [vmem:[#allocation10 + $0x34] sm:$0xf]
    %v190 = vld [vmem:[#allocation10 + $0x38] sm:$0xf]
    %v191 = vld [vmem:[#allocation10 + $0x3c] sm:$0xf]
    %v192 = vld [vmem:[#allocation10 + $0x40] sm:$0xf]
    %v193 = vld [vmem:[#allocation10 + $0x44] sm:$0xf]
    %v194 = vld [vmem:[#allocation10 + $0x48] sm:$0xf]
    %v195 = vld [vmem:[#allocation10 + $0x4c] sm:$0xf]
    %v196 = vld [vmem:[#allocation10 + $0x50] sm:$0xf]
    %v197 = vld [vmem:[#allocation10 + $0x54] sm:$0xf]
    %v198 = vld [vmem:[#allocation10 + $0x58] sm:$0xf]
    %v199 = vld [vmem:[#allocation10 + $0x5c] sm:$0xf]
    %v200 = vld [vmem:[#allocation10 + $0x60] sm:$0xf]
    %v201 = vld [vmem:[#allocation10 + $0x64] sm:$0xf]
    %v202 = vld [vmem:[#allocation10 + $0x68] sm:$0xf]
    %v203 = vld [vmem:[#allocation10 + $0x6c] sm:$0xf]
    %v204 = vld [vmem:[#allocation10 + $0x70] sm:$0xf]
    %v205 = vld [vmem:[#allocation10 + $0x74] sm:$0xf]
    %v206 = vld [vmem:[#allocation10 + $0x78] sm:$0xf]
    %v207 = vld [vmem:[#allocation10 + $0x7c] sm:$0xf]
    %v208 = vld [vmem:[#allocation10 + $0x80] sm:$0xf]
    %v209 = vld [vmem:[#allocation10 + $0x84] sm:$0xf]
    %v210 = vld [vmem:[#allocation10 + $0x88] sm:$0xf]
    %v211 = vld [vmem:[#allocation10 + $0x8c] sm:$0xf]
    %v212 = vld [vmem:[#allocation10 + $0x90] sm:$0xf]
    %v213 = vld [vmem:[#allocation10 + $0x94] sm:$0xf]
    %v214 = vld [vmem:[#allocation10 + $0x98] sm:$0xf]
    %v215 = vld [vmem:[#allocation10 + $0x9c] sm:$0xf]
    %v216 = vld [vmem:[#allocation10 + $0xa0] sm:$0xf]
    %v217 = vld [vmem:[#allocation10 + $0xa4] sm:$0xf]
    %v218 = vld [vmem:[#allocation10 + $0xa8] sm:$0xf]
    %v219 = vld [vmem:[#allocation10 + $0xac] sm:$0xf]
    %v220 = vld [vmem:[#allocation10 + $0xb0] sm:$0xf]
    %v221 = vld [vmem:[#allocation10 + $0xb4] sm:$0xf]
    %v222 = vld [vmem:[#allocation10 + $0xb8] sm:$0xf]
    %v223 = vld [vmem:[#allocation10 + $0xbc] sm:$0xf]
    %v224 = vld [vmem:[%s6] sm:$0x1]
    %v225 = vld [vmem:[#allocation11] sm:$0xf]
    %v226 = vld [vmem:[#allocation11 + $0x4] sm:$0xf]
    %v227 = vld [vmem:[#allocation11 + $0x8] sm:$0xf]
    %v228 = vld [vmem:[#allocation11 + $0xc] sm:$0xf]
    %v229 = vld [vmem:[#allocation11 + $0x10] sm:$0xf]
    %v230 = vld [vmem:[#allocation11 + $0x14] sm:$0xf]
    %v231 = vld [vmem:[#allocation11 + $0x18] sm:$0xf]
    %v232 = vld [vmem:[#allocation11 + $0x1c] sm:$0xf]
    %v233 = vld [vmem:[#allocation11 + $0x20] sm:$0xf]
    %v234 = vld [vmem:[#allocation11 + $0x24] sm:$0xf]
    %v235 = vld [vmem:[#allocation11 + $0x28] sm:$0xf]
    %v236 = vld [vmem:[#allocation11 + $0x2c] sm:$0xf]
    %v237 = vld [vmem:[#allocation11 + $0x30] sm:$0xf]
    %v238 = vld [vmem:[#allocation11 + $0x34] sm:$0xf]
    %v239 = vld [vmem:[#allocation11 + $0x38] sm:$0xf]
    %v240 = vld [vmem:[#allocation11 + $0x3c] sm:$0xf]
    %v241 = vld [vmem:[#allocation11 + $0x40] sm:$0xf]
    %v242 = vld [vmem:[#allocation11 + $0x44] sm:$0xf]
    %v243 = vld [vmem:[#allocation11 + $0x48] sm:$0xf]
    %v244 = vld [vmem:[#allocation11 + $0x4c] sm:$0xf]
    %v245 = vld [vmem:[#allocation11 + $0x50] sm:$0xf]
    %v246 = vld [vmem:[#allocation11 + $0x54] sm:$0xf]
    %v247 = vld [vmem:[#allocation11 + $0x58] sm:$0xf]
    %v248 = vld [vmem:[#allocation11 + $0x5c] sm:$0xf]
    %v249 = vld [vmem:[#allocation11 + $0x60] sm:$0xf]
    %v250 = vld [vmem:[#allocation11 + $0x64] sm:$0xf]
    %v251 = vld [vmem:[#allocation11 + $0x68] sm:$0xf]
    %v252 = vld [vmem:[#allocation11 + $0x6c] sm:$0xf]
    %v253 = vld [vmem:[#allocation11 + $0x70] sm:$0xf]
    %v254 = vld [vmem:[#allocation11 + $0x74] sm:$0xf]
    %v255 = vld [vmem:[#allocation11 + $0x78] sm:$0xf]
    %v256 = vld [vmem:[#allocation11 + $0x7c] sm:$0xf]
    %v257 = vld [vmem:[%s8] sm:$0x1]
    %v258 = vld [vmem:[#allocation13] sm:$0xf]
    %v259 = vld [vmem:[#allocation13 + $0x4] sm:$0xf]
    %v260 = vld [vmem:[#allocation13 + $0x8] sm:$0xf]
    %v261 = vld [vmem:[#allocation13 + $0xc] sm:$0xf]
    %v262 = vld [vmem:[#allocation13 + $0x10] sm:$0xf]
    %v263 = vld [vmem:[#allocation13 + $0x14] sm:$0xf]
    %v264 = vld [vmem:[#allocation13 + $0x18] sm:$0xf]
    %v265 = vld [vmem:[#allocation13 + $0x1c] sm:$0xf]
    %v266 = vld [vmem:[#allocation13 + $0x20] sm:$0xf]
    %v267 = vld [vmem:[#allocation13 + $0x24] sm:$0xf]
    %v268 = vld [vmem:[#allocation13 + $0x28] sm:$0xf]
    %v269 = vld [vmem:[#allocation13 + $0x2c] sm:$0xf]
    %v270 = vld [vmem:[#allocation13 + $0x30] sm:$0xf]
    %v271 = vld [vmem:[#allocation13 + $0x34] sm:$0xf]
    %v272 = vld [vmem:[#allocation13 + $0x38] sm:$0xf]
    %v273 = vld [vmem:[#allocation13 + $0x3c] sm:$0xf]
    %v274 = vld [vmem:[#allocation13 + $0x40] sm:$0xf]
    %v275 = vld [vmem:[#allocation13 + $0x44] sm:$0xf]
    %v276 = vld [vmem:[#allocation13 + $0x48] sm:$0xf]
    %v277 = vld [vmem:[#allocation13 + $0x4c] sm:$0xf]
    %v278 = vld [vmem:[#allocation13 + $0x50] sm:$0xf]
    %v279 = vld [vmem:[#allocation13 + $0x54] sm:$0xf]
    %v280 = vld [vmem:[#allocation13 + $0x58] sm:$0xf]
    %v281 = vld [vmem:[#allocation13 + $0x5c] sm:$0xf]
    %v282 = vld [vmem:[#allocation13 + $0x60] sm:$0xf]
    %v283 = vld [vmem:[#allocation13 + $0x64] sm:$0xf]
    %v284 = vld [vmem:[#allocation13 + $0x68] sm:$0xf]
    %v285 = vld [vmem:[#allocation13 + $0x6c] sm:$0xf]
    %v286 = vld [vmem:[#allocation13 + $0x70] sm:$0xf]
    %v287 = vld [vmem:[#allocation13 + $0x74] sm:$0xf]
    %v288 = vld [vmem:[#allocation13 + $0x78] sm:$0xf]
    %v289 = vld [vmem:[#allocation13 + $0x7c] sm:$0xf]
    %v290 = vld [vmem:[#allocation13 + $0x80] sm:$0xf]
    %v291 = vld [vmem:[#allocation13 + $0x84] sm:$0xf]
    %v292 = vld [vmem:[#allocation13 + $0x88] sm:$0xf]
    %v293 = vld [vmem:[#allocation13 + $0x8c] sm:$0xf]
    %v294 = vld [vmem:[#allocation13 + $0x90] sm:$0xf]
    %v295 = vld [vmem:[#allocation13 + $0x94] sm:$0xf]
    %v296 = vld [vmem:[#allocation13 + $0x98] sm:$0xf]
    %v297 = vld [vmem:[#allocation13 + $0x9c] sm:$0xf]
    %v298 = vld [vmem:[#allocation13 + $0xa0] sm:$0xf]
    %v299 = vld [vmem:[#allocation13 + $0xa4] sm:$0xf]
    %v300 = vld [vmem:[#allocation13 + $0xa8] sm:$0xf]
    %v301 = vld [vmem:[#allocation13 + $0xac] sm:$0xf]
    %v302 = vld [vmem:[#allocation13 + $0xb0] sm:$0xf]
    %v303 = vld [vmem:[#allocation13 + $0xb4] sm:$0xf]
    %v304 = vld [vmem:[#allocation13 + $0xb8] sm:$0xf]
    %v305 = vld [vmem:[#allocation13 + $0xbc] sm:$0xf]
    %v306 = vld [vmem:[%s10] sm:$0x1]
    %v307 = vld [vmem:[#allocation14] sm:$0xf]
    %v308 = vld [vmem:[#allocation14 + $0x4] sm:$0xf]
    %v309 = vld [vmem:[#allocation14 + $0x8] sm:$0xf]
    %v310 = vld [vmem:[#allocation14 + $0xc] sm:$0xf]
    %v311 = vld [vmem:[#allocation14 + $0x10] sm:$0xf]
    %v312 = vld [vmem:[#allocation14 + $0x14] sm:$0xf]
    %v313 = vld [vmem:[#allocation14 + $0x18] sm:$0xf]
    %v314 = vld [vmem:[#allocation14 + $0x1c] sm:$0xf]
    %v315 = vld [vmem:[#allocation14 + $0x20] sm:$0xf]
    %v316 = vld [vmem:[#allocation14 + $0x24] sm:$0xf]
    %v317 = vld [vmem:[#allocation14 + $0x28] sm:$0xf]
    %v318 = vld [vmem:[#allocation14 + $0x2c] sm:$0xf]
    %v319 = vld [vmem:[#allocation14 + $0x30] sm:$0xf]
    %v320 = vld [vmem:[#allocation14 + $0x34] sm:$0xf]
    %v321 = vld [vmem:[#allocation14 + $0x38] sm:$0xf]
    %v322 = vld [vmem:[#allocation14 + $0x3c] sm:$0xf]
    %v323 = vld [vmem:[#allocation14 + $0x40] sm:$0xf]
    %v324 = vld [vmem:[#allocation14 + $0x44] sm:$0xf]
    %v325 = vld [vmem:[#allocation14 + $0x48] sm:$0xf]
    %v326 = vld [vmem:[#allocation14 + $0x4c] sm:$0xf]
    %v327 = vld [vmem:[#allocation14 + $0x50] sm:$0xf]
    %v328 = vld [vmem:[#allocation14 + $0x54] sm:$0xf]
    %v329 = vld [vmem:[#allocation14 + $0x58] sm:$0xf]
    %v330 = vld [vmem:[#allocation14 + $0x5c] sm:$0xf]
    %v331 = vld [vmem:[#allocation14 + $0x60] sm:$0xf]
    %v332 = vld [vmem:[#allocation14 + $0x64] sm:$0xf]
    %v333 = vld [vmem:[#allocation14 + $0x68] sm:$0xf]
    %v334 = vld [vmem:[#allocation14 + $0x6c] sm:$0xf]
    %v335 = vld [vmem:[#allocation14 + $0x70] sm:$0xf]
    %v336 = vld [vmem:[#allocation14 + $0x74] sm:$0xf]
    %v337 = vld [vmem:[#allocation14 + $0x78] sm:$0xf]
    %v338 = vld [vmem:[#allocation14 + $0x7c] sm:$0xf]
    %v339 = vld [vmem:[%s12] sm:$0x1]
    %v340 = vld [vmem:[%s13] sm:$0xf]
    %v341 = vld [vmem:[%s13 + $0x4] sm:$0xf]
    %v342 = vld [vmem:[%s13 + $0x8] sm:$0xf]
    %v343 = vld [vmem:[%s13 + $0xc] sm:$0xf]
    %v344 = vld [vmem:[%s13 + $0x10] sm:$0xf]
    %v345 = vld [vmem:[%s13 + $0x14] sm:$0xf]
    %v346 = vld [vmem:[%s13 + $0x18] sm:$0xf]
    %v347 = vld [vmem:[%s13 + $0x1c] sm:$0xf]
    %v348 = vld [vmem:[%s13 + $0x20] sm:$0xf]
    %v349 = vld [vmem:[%s13 + $0x24] sm:$0xf]
    %v350 = vld [vmem:[%s13 + $0x28] sm:$0xf]
    %v351 = vld [vmem:[%s13 + $0x2c] sm:$0xf]
    %v352 = vld [vmem:[%s13 + $0x30] sm:$0xf]
    %v353 = vld [vmem:[%s13 + $0x34] sm:$0xf]
    %v354 = vld [vmem:[%s13 + $0x38] sm:$0xf]
    %v355 = vld [vmem:[%s13 + $0x3c] sm:$0xf]
    %v356 = vld [vmem:[%s14] sm:$0x1]
    %v357 = vpack.c.bf16 %v165, %v164
    %v360 = vunpack.c.l.b16 %v169
    %v361 = vunpack.c.l.b16 %v170
    %v362 = vpack.c.b16 %v361, %v360
    %vm363 = vcmask 130048
    %v365 = vsel %vm363, %v362, 0
    %367 = vmatprep.subr.bf16.mxu0 0
    %368 = vmatpush1.bf16.msra.mxu0 %v357
    %369 = vmatprep.subr.bf16.mxu0 0
    %370 = vmatpush1.bf16.msra.mxu0 0
    %371 = vmatprep.subr.bf16.mxu0 0
    %372 = vmatpush1.bf16.msra.mxu0 0
    %373 = vmatprep.subr.bf16.mxu0 0
    %374 = vmatpush1.bf16.msra.mxu0 0
    %375 = vmatprep.subr.bf16.mxu0 0
    %376 = vmatpush1.bf16.msra.mxu0 0
    %377 = vmatprep.subr.bf16.mxu0 0
    %378 = vmatpush1.bf16.msra.mxu0 0
    %379 = vmatprep.subr.bf16.mxu0 0
    %380 = vmatpush1.bf16.msra.mxu0 0
    %381 = vmatprep.subr.bf16.mxu0 0
    %382 = vmatpush1.bf16.msra.mxu0 0
    %383 = vmatprep.subr.bf16.mxu0 0
    %384 = vmatpush1.bf16.msra.mxu0 0
    %385 = vmatprep.subr.bf16.mxu0 0
    %386 = vmatpush1.bf16.msra.mxu0 0
    %387 = vmatprep.subr.bf16.mxu0 0
    %388 = vmatpush1.bf16.msra.mxu0 0
    %389 = vmatprep.subr.bf16.mxu0 0
    %390 = vmatpush1.bf16.msra.mxu0 0
    %391 = vmatprep.subr.bf16.mxu0 0
    %392 = vmatpush1.bf16.msra.mxu0 0
    %393 = vmatprep.subr.bf16.mxu0 0
    %394 = vmatpush1.bf16.msra.mxu0 0
    %395 = vmatprep.subr.bf16.mxu0 0
    %396 = vmatpush1.bf16.msra.mxu0 0
    %397 = vmatprep.subr.bf16.mxu0 0
    %398 = vmatpush1.bf16.msra.mxu0 0
    %399 = vmatprep.mubr.bf16.mxu0 0
    %400 = vmatmul.mubr.bf16.gmra.mrb[0].mxu0 %v365
    %v401 = vpop.f32.mrb[0].mxu0
    %v402 = vadd.f32 0.0, %v401
    %v403 = vpop.f32.mrb[0].mxu0
    %v404 = vpop.f32.mrb[0].mxu0
    %v405 = vadd.f32 0.0, %v404
    %v406 = vpop.f32.mrb[0].mxu0
    %407 = vdwg.mxu0
    %v408 = vpack.c.bf16 %v405, %v402
    %v409 = vpack.c.bf16 %v167, %v166
    %v410 = vpack.c.bf16 %v168, %v168
    %v413 = vunpack.c.l.b16 %v174
    %v414 = vunpack.c.l.b16 %v175
    %v415 = vpack.c.b16 %v414, %v413
    %vm416 = vcmask 195584
    %v418 = vsel %vm416, %v415, 0
    %vm420 = vcmask 1043456
    %v422 = vsel %vm420, %v410, 0
    %424 = vmatprep.subr.bf16.mxu0 0
    %425 = vmatpush1.bf16.msra.mxu0 %v409
    %426 = vmatprep.subr.bf16.mxu0 0
    %427 = vmatpush1.bf16.msra.mxu0 %v422
    %428 = vmatprep.subr.bf16.mxu0 0
    %429 = vmatpush1.bf16.msra.mxu0 0
    %430 = vmatprep.subr.bf16.mxu0 0
    %431 = vmatpush1.bf16.msra.mxu0 0
    %432 = vmatprep.subr.bf16.mxu0 0
    %433 = vmatpush1.bf16.msra.mxu0 0
    %434 = vmatprep.subr.bf16.mxu0 0
    %435 = vmatpush1.bf16.msra.mxu0 0
    %436 = vmatprep.subr.bf16.mxu0 0
    %437 = vmatpush1.bf16.msra.mxu0 0
    %438 = vmatprep.subr.bf16.mxu0 0
    %439 = vmatpush1.bf16.msra.mxu0 0
    %440 = vmatprep.subr.bf16.mxu0 0
    %441 = vmatpush1.bf16.msra.mxu0 0
    %442 = vmatprep.subr.bf16.mxu0 0
    %443 = vmatpush1.bf16.msra.mxu0 0
    %444 = vmatprep.subr.bf16.mxu0 0
    %445 = vmatpush1.bf16.msra.mxu0 0
    %446 = vmatprep.subr.bf16.mxu0 0
    %447 = vmatpush1.bf16.msra.mxu0 0
    %448 = vmatprep.subr.bf16.mxu0 0
    %449 = vmatpush1.bf16.msra.mxu0 0
    %450 = vmatprep.subr.bf16.mxu0 0
    %451 = vmatpush1.bf16.msra.mxu0 0
    %452 = vmatprep.subr.bf16.mxu0 0
    %453 = vmatpush1.bf16.msra.mxu0 0
    %454 = vmatprep.subr.bf16.mxu0 0
    %455 = vmatpush1.bf16.msra.mxu0 0
    %456 = vmatprep.mubr.bf16.mxu0 0
    %457 = vmatmul.mubr.bf16.gmra.mrb[0].mxu0 %v418
    %v458 = vpop.f32.mrb[0].mxu0
    %v459 = vadd.f32 0.0, %v458
    %v460 = vpop.f32.mrb[0].mxu0
    %v461 = vpop.f32.mrb[0].mxu0
    %v462 = vadd.f32 0.0, %v461
    %v463 = vpop.f32.mrb[0].mxu0
    %464 = vdwg.mxu0
    %v465 = vpack.c.bf16 %v462, %v459
    %v467 = vlaneseq
    %v468 = vshrl.u32 %v467, 7
    %v469 = vsub.s32 0, %v468
    %v470 = vrot.slane %v224, %v469
    %v520 = vunpack.c.l.b16 %v176
    %v521 = vunpack.c.l.b16 %v177
    %v522 = vunpack.c.l.b16 %v178
    %v523 = vunpack.c.l.b16 %v179
    %v524 = vunpack.c.l.b16 %v180
    %v525 = vunpack.c.l.b16 %v181
    %v526 = vunpack.c.l.b16 %v182
    %v527 = vunpack.c.l.b16 %v183
    %v528 = vunpack.c.l.b16 %v184
    %v529 = vunpack.c.l.b16 %v185
    %v530 = vunpack.c.l.b16 %v186
    %v531 = vunpack.c.l.b16 %v187
    %v532 = vunpack.c.l.b16 %v188
    %v533 = vunpack.c.l.b16 %v189
    %v534 = vunpack.c.l.b16 %v190
    %v535 = vunpack.c.l.b16 %v191
    %v536 = vunpack.c.l.b16 %v192
    %v537 = vunpack.c.l.b16 %v193
    %v538 = vunpack.c.l.b16 %v194
    %v539 = vunpack.c.l.b16 %v195
    %v540 = vunpack.c.l.b16 %v196
    %v541 = vunpack.c.l.b16 %v197
    %v542 = vunpack.c.l.b16 %v198
    %v543 = vunpack.c.l.b16 %v199
    %v544 = vunpack.c.l.b16 %v200
    %v545 = vunpack.c.l.b16 %v201
    %v546 = vunpack.c.l.b16 %v202
    %v547 = vunpack.c.l.b16 %v203
    %v548 = vunpack.c.l.b16 %v204
    %v549 = vunpack.c.l.b16 %v205
    %v550 = vunpack.c.l.b16 %v206
    %v551 = vunpack.c.l.b16 %v207
    %v552 = vunpack.c.l.b16 %v208
    %v553 = vunpack.c.l.b16 %v209
    %v554 = vunpack.c.l.b16 %v210
    %v555 = vunpack.c.l.b16 %v211
    %v556 = vunpack.c.l.b16 %v212
    %v557 = vunpack.c.l.b16 %v213
    %v558 = vunpack.c.l.b16 %v214
    %v559 = vunpack.c.l.b16 %v215
    %v560 = vunpack.c.l.b16 %v216
    %v561 = vunpack.c.l.b16 %v217
    %v562 = vunpack.c.l.b16 %v218
    %v563 = vunpack.c.l.b16 %v219
    %v564 = vunpack.c.l.b16 %v220
    %v565 = vunpack.c.l.b16 %v221
    %v566 = vunpack.c.l.b16 %v222
    %v567 = vunpack.c.l.b16 %v223
    %v568 = vpack.c.b16 %v521, %v520
    %v569 = vpack.c.b16 %v523, %v522
    %v570 = vpack.c.b16 %v525, %v524
    %v571 = vpack.c.b16 %v527, %v526
    %v572 = vpack.c.b16 %v529, %v528
    %v573 = vpack.c.b16 %v531, %v530
    %v574 = vpack.c.b16 %v533, %v532
    %v575 = vpack.c.b16 %v535, %v534
    %v576 = vpack.c.b16 %v537, %v536
    %v577 = vpack.c.b16 %v539, %v538
    %v578 = vpack.c.b16 %v541, %v540
    %v579 = vpack.c.b16 %v543, %v542
    %v580 = vpack.c.b16 %v545, %v544
    %v581 = vpack.c.b16 %v547, %v546
    %v582 = vpack.c.b16 %v549, %v548
    %v583 = vpack.c.b16 %v551, %v550
    %v584 = vpack.c.b16 %v553, %v552
    %v585 = vpack.c.b16 %v555, %v554
    %v586 = vpack.c.b16 %v557, %v556
    %v587 = vpack.c.b16 %v559, %v558
    %v588 = vpack.c.b16 %v561, %v560
    %v589 = vpack.c.b16 %v563, %v562
    %v590 = vpack.c.b16 %v565, %v564
    %v591 = vpack.c.b16 %v567, %v566
    %616 = vmatprep.subr.bf16.mxu0 0
    %617 = vmatpush1.bf16.msra.mxu0 %v568
    %618 = vmatprep.subr.bf16.mxu0 0
    %619 = vmatpush1.bf16.msra.mxu0 %v569
    %620 = vmatprep.subr.bf16.mxu0 0
    %621 = vmatpush1.bf16.msra.mxu0 %v570
    %622 = vmatprep.subr.bf16.mxu0 0
    %623 = vmatpush1.bf16.msra.mxu0 %v571
    %624 = vmatprep.subr.bf16.mxu0 0
    %625 = vmatpush1.bf16.msra.mxu0 %v572
    %626 = vmatprep.subr.bf16.mxu0 0
    %627 = vmatpush1.bf16.msra.mxu0 %v573
    %628 = vmatprep.subr.bf16.mxu0 0
    %629 = vmatpush1.bf16.msra.mxu0 %v574
    %630 = vmatprep.subr.bf16.mxu0 0
    %631 = vmatpush1.bf16.msra.mxu0 %v575
    %632 = vmatprep.subr.bf16.mxu0 0
    %633 = vmatpush1.bf16.msra.mxu0 %v576
    %634 = vmatprep.subr.bf16.mxu0 0
    %635 = vmatpush1.bf16.msra.mxu0 %v577
    %636 = vmatprep.subr.bf16.mxu0 0
    %637 = vmatpush1.bf16.msra.mxu0 %v578
    %638 = vmatprep.subr.bf16.mxu0 0
    %639 = vmatpush1.bf16.msra.mxu0 %v579
    %640 = vmatprep.subr.bf16.mxu0 0
    %641 = vmatpush1.bf16.msra.mxu0 %v580
    %642 = vmatprep.subr.bf16.mxu0 0
    %643 = vmatpush1.bf16.msra.mxu0 %v581
    %644 = vmatprep.subr.bf16.mxu0 0
    %645 = vmatpush1.bf16.msra.mxu0 %v582
    %646 = vmatprep.subr.bf16.mxu0 0
    %647 = vmatpush1.bf16.msra.mxu0 %v583
    %648 = vmatprep.mubr.bf16.mxu0 %v465
    %649 = vmatmul.mubr.bf16.gmra.mrb[0].mxu0 %v408
    %v650 = vpop.f32.mrb[0].mxu0
    %v651 = vadd.f32 %v470, %v650
    %v652 = vpop.f32.mrb[0].mxu0
    %v653 = vpop.f32.mrb[0].mxu0
    %v654 = vadd.f32 %v470, %v653
    %v655 = vpop.f32.mrb[0].mxu0
    %656 = vdwg.mxu0
    %657 = vmatprep.subr.bf16.mxu0 0
    %658 = vmatpush1.bf16.msra.mxu0 %v584
    %659 = vmatprep.subr.bf16.mxu0 0
    %660 = vmatpush1.bf16.msra.mxu0 %v585
    %661 = vmatprep.subr.bf16.mxu0 0
    %662 = vmatpush1.bf16.msra.mxu0 %v586
    %663 = vmatprep.subr.bf16.mxu0 0
    %664 = vmatpush1.bf16.msra.mxu0 %v587
    %665 = vmatprep.subr.bf16.mxu0 0
    %666 = vmatpush1.bf16.msra.mxu0 %v588
    %667 = vmatprep.subr.bf16.mxu0 0
    %668 = vmatpush1.bf16.msra.mxu0 %v589
    %669 = vmatprep.subr.bf16.mxu0 0
    %670 = vmatpush1.bf16.msra.mxu0 %v590
    %671 = vmatprep.subr.bf16.mxu0 0
    %672 = vmatpush1.bf16.msra.mxu0 %v591
    %673 = vmatprep.subr.bf16.mxu0 0
    %674 = vmatpush1.bf16.msra.mxu0 0
    %675 = vmatprep.subr.bf16.mxu0 0
    %676 = vmatpush1.bf16.msra.mxu0 0
    %677 = vmatprep.subr.bf16.mxu0 0
    %678 = vmatpush1.bf16.msra.mxu0 0
    %679 = vmatprep.subr.bf16.mxu0 0
    %680 = vmatpush1.bf16.msra.mxu0 0
    %681 = vmatprep.subr.bf16.mxu0 0
    %682 = vmatpush1.bf16.msra.mxu0 0
    %683 = vmatprep.subr.bf16.mxu0 0
    %684 = vmatpush1.bf16.msra.mxu0 0
    %685 = vmatprep.subr.bf16.mxu0 0
    %686 = vmatpush1.bf16.msra.mxu0 0
    %687 = vmatprep.subr.bf16.mxu0 0
    %688 = vmatpush1.bf16.msra.mxu0 0
    %689 = vmatprep.mubr.bf16.mxu0 0
    %690 = vmatmul.mubr.bf16.gmra.mrb[0].mxu0 %v357
    %v691 = vpop.f32.mrb[0].mxu0
    %v692 = vadd.f32 %v651, %v691
    %v693 = vpop.f32.mrb[0].mxu0
    %v694 = vpop.f32.mrb[0].mxu0
    %v695 = vadd.f32 %v654, %v694
    %v696 = vpop.f32.mrb[0].mxu0
    %697 = vdwg.mxu0
    %v698 = vmax.f32 %v692, 0.0
    %v699 = vmax.f32 %v695, 0.0
    %v703 = vunpack.c.l.b16 %v171
    %v704 = vunpack.c.l.b16 %v172
    %v705 = vunpack.c.l.b16 %v173
    %v706 = vpack.c.b16 %v704, %v703
    %v707 = vpack.c.b16 %v705, %v705
    %v709 = vsel %vm363, %v706, 0
    %v712 = vsel %vm363, %v707, 0
    %714 = vmatprep.subr.bf16.mxu0 0
    %715 = vmatpush1.bf16.msra.mxu0 %v357
    %716 = vmatprep.subr.bf16.mxu0 0
    %717 = vmatpush1.bf16.msra.mxu0 0
    %718 = vmatprep.subr.bf16.mxu0 0
    %719 = vmatpush1.bf16.msra.mxu0 0
    %720 = vmatprep.subr.bf16.mxu0 0
    %721 = vmatpush1.bf16.msra.mxu0 0
    %722 = vmatprep.subr.bf16.mxu0 0
    %723 = vmatpush1.bf16.msra.mxu0 0
    %724 = vmatprep.subr.bf16.mxu0 0
    %725 = vmatpush1.bf16.msra.mxu0 0
    %726 = vmatprep.subr.bf16.mxu0 0
    %727 = vmatpush1.bf16.msra.mxu0 0
    %728 = vmatprep.subr.bf16.mxu0 0
    %729 = vmatpush1.bf16.msra.mxu0 0
    %730 = vmatprep.subr.bf16.mxu0 0
    %731 = vmatpush1.bf16.msra.mxu0 0
    %732 = vmatprep.subr.bf16.mxu0 0
    %733 = vmatpush1.bf16.msra.mxu0 0
    %734 = vmatprep.subr.bf16.mxu0 0
    %735 = vmatpush1.bf16.msra.mxu0 0
    %736 = vmatprep.subr.bf16.mxu0 0
    %737 = vmatpush1.bf16.msra.mxu0 0
    %738 = vmatprep.subr.bf16.mxu0 0
    %739 = vmatpush1.bf16.msra.mxu0 0
    %740 = vmatprep.subr.bf16.mxu0 0
    %741 = vmatpush1.bf16.msra.mxu0 0
    %742 = vmatprep.subr.bf16.mxu0 0
    %743 = vmatpush1.bf16.msra.mxu0 0
    %744 = vmatprep.subr.bf16.mxu0 0
    %745 = vmatpush1.bf16.msra.mxu0 0
    %746 = vmatprep.mubr.bf16.mxu0 0
    %747 = vmatmul.mubr.bf16.gmra.mrb[0].mxu0 %v709
    %v748 = vpop.f32.mrb[0].mxu0
    %v749 = vadd.f32 0.0, %v748
    %v750 = vpop.f32.mrb[0].mxu0
    %v751 = vpop.f32.mrb[0].mxu0
    %v752 = vadd.f32 0.0, %v751
    %v753 = vpop.f32.mrb[0].mxu0
    %754 = vmatprep.mubr.bf16.mxu0 0
    %755 = vmatmul.mubr.bf16.gmra.mrb[0].mxu0 %v712
    %v756 = vpop.f32.mrb[0].mxu0
    %v757 = vadd.f32 0.0, %v756
    %v758 = vpop.f32.mrb[0].mxu0
    %v759 = vpop.f32.mrb[0].mxu0
    %v760 = vpop.f32.mrb[0].mxu0
    %761 = vdwg.mxu0
    %v762 = vpack.c.bf16 %v752, %v749
    %v763 = vpack.c.bf16 %v757, %v757
    %v765 = vlaneseq
    %v766 = vshrl.u32 %v765, 7
    %v767 = vsub.s32 0, %v766
    %v768 = vrot.slane %v257, %v767
    %v802 = vunpack.c.l.b16 %v225
    %v803 = vunpack.c.l.b16 %v226
    %v804 = vunpack.c.l.b16 %v227
    %v805 = vunpack.c.l.b16 %v228
    %v806 = vunpack.c.l.b16 %v229
    %v807 = vunpack.c.l.b16 %v230
    %v808 = vunpack.c.l.b16 %v231
    %v809 = vunpack.c.l.b16 %v232
    %v810 = vunpack.c.l.b16 %v233
    %v811 = vunpack.c.l.b16 %v234
    %v812 = vunpack.c.l.b16 %v235
    %v813 = vunpack.c.l.b16 %v236
    %v814 = vunpack.c.l.b16 %v237
    %v815 = vunpack.c.l.b16 %v238
    %v816 = vunpack.c.l.b16 %v239
    %v817 = vunpack.c.l.b16 %v240
    %v818 = vunpack.c.l.b16 %v241
    %v819 = vunpack.c.l.b16 %v242
    %v820 = vunpack.c.l.b16 %v243
    %v821 = vunpack.c.l.b16 %v244
    %v822 = vunpack.c.l.b16 %v245
    %v823 = vunpack.c.l.b16 %v246
    %v824 = vunpack.c.l.b16 %v247
    %v825 = vunpack.c.l.b16 %v248
    %v826 = vunpack.c.l.b16 %v249
    %v827 = vunpack.c.l.b16 %v250
    %v828 = vunpack.c.l.b16 %v251
    %v829 = vunpack.c.l.b16 %v252
    %v830 = vunpack.c.l.b16 %v253
    %v831 = vunpack.c.l.b16 %v254
    %v832 = vunpack.c.l.b16 %v255
    %v833 = vunpack.c.l.b16 %v256
    %v834 = vpack.c.b16 %v803, %v802
    %v835 = vpack.c.b16 %v805, %v804
    %v836 = vpack.c.b16 %v807, %v806
    %v837 = vpack.c.b16 %v809, %v808
    %v838 = vpack.c.b16 %v811, %v810
    %v839 = vpack.c.b16 %v813, %v812
    %v840 = vpack.c.b16 %v815, %v814
    %v841 = vpack.c.b16 %v817, %v816
    %v842 = vpack.c.b16 %v819, %v818
    %v843 = vpack.c.b16 %v821, %v820
    %v844 = vpack.c.b16 %v823, %v822
    %v845 = vpack.c.b16 %v825, %v824
    %v846 = vpack.c.b16 %v827, %v826
    %v847 = vpack.c.b16 %v829, %v828
    %v848 = vpack.c.b16 %v831, %v830
    %v849 = vpack.c.b16 %v833, %v832
    %866 = vmatprep.subr.bf16.mxu0 0
    %867 = vmatpush1.bf16.msra.mxu0 %v834
    %868 = vmatprep.subr.bf16.mxu0 0
    %869 = vmatpush1.bf16.msra.mxu0 %v835
    %870 = vmatprep.subr.bf16.mxu0 0
    %871 = vmatpush1.bf16.msra.mxu0 %v836
    %872 = vmatprep.subr.bf16.mxu0 0
    %873 = vmatpush1.bf16.msra.mxu0 %v837
    %874 = vmatprep.subr.bf16.mxu0 0
    %875 = vmatpush1.bf16.msra.mxu0 %v838
    %876 = vmatprep.subr.bf16.mxu0 0
    %877 = vmatpush1.bf16.msra.mxu0 %v839
    %878 = vmatprep.subr.bf16.mxu0 0
    %879 = vmatpush1.bf16.msra.mxu0 %v840
    %880 = vmatprep.subr.bf16.mxu0 0
    %881 = vmatpush1.bf16.msra.mxu0 %v841
    %882 = vmatprep.subr.bf16.mxu0 0
    %883 = vmatpush1.bf16.msra.mxu0 %v842
    %884 = vmatprep.subr.bf16.mxu0 0
    %885 = vmatpush1.bf16.msra.mxu0 %v843
    %886 = vmatprep.subr.bf16.mxu0 0
    %887 = vmatpush1.bf16.msra.mxu0 %v844
    %888 = vmatprep.subr.bf16.mxu0 0
    %889 = vmatpush1.bf16.msra.mxu0 %v845
    %890 = vmatprep.subr.bf16.mxu0 0
    %891 = vmatpush1.bf16.msra.mxu0 %v846
    %892 = vmatprep.subr.bf16.mxu0 0
    %893 = vmatpush1.bf16.msra.mxu0 %v847
    %894 = vmatprep.subr.bf16.mxu0 0
    %895 = vmatpush1.bf16.msra.mxu0 %v848
    %896 = vmatprep.subr.bf16.mxu0 0
    %897 = vmatpush1.bf16.msra.mxu0 %v849
    %898 = vmatprep.mubr.bf16.mxu0 %v409
    %899 = vmatmul.mubr.bf16.gmra.mrb[0].mxu0 %v762
    %v900 = vpop.f32.mrb[0].mxu0
    %v901 = vadd.f32 %v768, %v900
    %v902 = vpop.f32.mrb[0].mxu0
    %v903 = vpop.f32.mrb[0].mxu0
    %v904 = vadd.f32 %v768, %v903
    %v905 = vpop.f32.mrb[0].mxu0
    %906 = vmatprep.mubr.bf16.mxu0 %v410
    %907 = vmatmul.mubr.bf16.gmra.mrb[0].mxu0 %v763
    %v908 = vpop.f32.mrb[0].mxu0
    %v909 = vadd.f32 %v768, %v908
    %v910 = vpop.f32.mrb[0].mxu0
    %v911 = vpop.f32.mrb[0].mxu0
    %v912 = vpop.f32.mrb[0].mxu0
    %913 = vdwg.mxu0
    %v914 = vmax.f32 %v901, 0.0
    %v915 = vmax.f32 %v904, 0.0
    %v916 = vmax.f32 %v909, 0.0
    %v917 = vpack.c.bf16 %v699, %v698
    %918 = vmatprep.subr.bf16.mxu0 0
    %919 = vmatpush1.bf16.msra.mxu0 %v917
    %920 = vmatprep.subr.bf16.mxu0 0
    %921 = vmatpush1.bf16.msra.mxu0 0
    %922 = vmatprep.subr.bf16.mxu0 0
    %923 = vmatpush1.bf16.msra.mxu0 0
    %924 = vmatprep.subr.bf16.mxu0 0
    %925 = vmatpush1.bf16.msra.mxu0 0
    %926 = vmatprep.subr.bf16.mxu0 0
    %927 = vmatpush1.bf16.msra.mxu0 0
    %928 = vmatprep.subr.bf16.mxu0 0
    %929 = vmatpush1.bf16.msra.mxu0 0
    %930 = vmatprep.subr.bf16.mxu0 0
    %931 = vmatpush1.bf16.msra.mxu0 0
    %932 = vmatprep.subr.bf16.mxu0 0
    %933 = vmatpush1.bf16.msra.mxu0 0
    %934 = vmatprep.subr.bf16.mxu0 0
    %935 = vmatpush1.bf16.msra.mxu0 0
    %936 = vmatprep.subr.bf16.mxu0 0
    %937 = vmatpush1.bf16.msra.mxu0 0
    %938 = vmatprep.subr.bf16.mxu0 0
    %939 = vmatpush1.bf16.msra.mxu0 0
    %940 = vmatprep.subr.bf16.mxu0 0
    %941 = vmatpush1.bf16.msra.mxu0 0
    %942 = vmatprep.subr.bf16.mxu0 0
    %943 = vmatpush1.bf16.msra.mxu0 0
    %944 = vmatprep.subr.bf16.mxu0 0
    %945 = vmatpush1.bf16.msra.mxu0 0
    %946 = vmatprep.subr.bf16.mxu0 0
    %947 = vmatpush1.bf16.msra.mxu0 0
    %948 = vmatprep.subr.bf16.mxu0 0
    %949 = vmatpush1.bf16.msra.mxu0 0
    %950 = vmatprep.mubr.bf16.mxu0 0
    %951 = vmatmul.mubr.bf16.gmra.mrb[0].mxu0 %v365
    %v952 = vpop.f32.mrb[0].mxu0
    %v953 = vadd.f32 0.0, %v952
    %v954 = vpop.f32.mrb[0].mxu0
    %v955 = vpop.f32.mrb[0].mxu0
    %v956 = vadd.f32 0.0, %v955
    %v957 = vpop.f32.mrb[0].mxu0
    %958 = vdwg.mxu0
    %v959 = vpack.c.bf16 %v956, %v953
    %v960 = vpack.c.bf16 %v915, %v914
    %v961 = vpack.c.bf16 %v916, %v916
    %v963 = vsel %vm420, %v961, 0
    %965 = vmatprep.subr.bf16.mxu0 0
    %966 = vmatpush1.bf16.msra.mxu0 %v960
    %967 = vmatprep.subr.bf16.mxu0 0
    %968 = vmatpush1.bf16.msra.mxu0 %v963
    %969 = vmatprep.subr.bf16.mxu0 0
    %970 = vmatpush1.bf16.msra.mxu0 0
    %971 = vmatprep.subr.bf16.mxu0 0
    %972 = vmatpush1.bf16.msra.mxu0 0
    %973 = vmatprep.subr.bf16.mxu0 0
    %974 = vmatpush1.bf16.msra.mxu0 0
    %975 = vmatprep.subr.bf16.mxu0 0
    %976 = vmatpush1.bf16.msra.mxu0 0
    %977 = vmatprep.subr.bf16.mxu0 0
    %978 = vmatpush1.bf16.msra.mxu0 0
    %979 = vmatprep.subr.bf16.mxu0 0
    %980 = vmatpush1.bf16.msra.mxu0 0
    %981 = vmatprep.subr.bf16.mxu0 0
    %982 = vmatpush1.bf16.msra.mxu0 0
    %983 = vmatprep.subr.bf16.mxu0 0
    %984 = vmatpush1.bf16.msra.mxu0 0
    %985 = vmatprep.subr.bf16.mxu0 0
    %986 = vmatpush1.bf16.msra.mxu0 0
    %987 = vmatprep.subr.bf16.mxu0 0
    %988 = vmatpush1.bf16.msra.mxu0 0
    %989 = vmatprep.subr.bf16.mxu0 0
    %990 = vmatpush1.bf16.msra.mxu0 0
    %991 = vmatprep.subr.bf16.mxu0 0
    %992 = vmatpush1.bf16.msra.mxu0 0
    %993 = vmatprep.subr.bf16.mxu0 0
    %994 = vmatpush1.bf16.msra.mxu0 0
    %995 = vmatprep.subr.bf16.mxu0 0
    %996 = vmatpush1.bf16.msra.mxu0 0
    %997 = vmatprep.mubr.bf16.mxu0 0
    %998 = vmatmul.mubr.bf16.gmra.mrb[0].mxu0 %v418
    %v999 = vpop.f32.mrb[0].mxu0
    %v1000 = vadd.f32 0.0, %v999
    %v1001 = vpop.f32.mrb[0].mxu0
    %v1002 = vpop.f32.mrb[0].mxu0
    %v1003 = vadd.f32 0.0, %v1002
    %v1004 = vpop.f32.mrb[0].mxu0
    %1005 = vdwg.mxu0
    %v1006 = vpack.c.bf16 %v1003, %v1000
    %v1008 = vlaneseq
    %v1009 = vshrl.u32 %v1008, 7
    %v1010 = vsub.s32 0, %v1009
    %v1011 = vrot.slane %v306, %v1010
    %v1061 = vunpack.c.l.b16 %v258
    %v1062 = vunpack.c.l.b16 %v259
    %v1063 = vunpack.c.l.b16 %v260
    %v1064 = vunpack.c.l.b16 %v261
    %v1065 = vunpack.c.l.b16 %v262
    %v1066 = vunpack.c.l.b16 %v263
    %v1067 = vunpack.c.l.b16 %v264
    %v1068 = vunpack.c.l.b16 %v265
    %v1069 = vunpack.c.l.b16 %v266
    %v1070 = vunpack.c.l.b16 %v267
    %v1071 = vunpack.c.l.b16 %v268
    %v1072 = vunpack.c.l.b16 %v269
    %v1073 = vunpack.c.l.b16 %v270
    %v1074 = vunpack.c.l.b16 %v271
    %v1075 = vunpack.c.l.b16 %v272
    %v1076 = vunpack.c.l.b16 %v273
    %v1077 = vunpack.c.l.b16 %v274
    %v1078 = vunpack.c.l.b16 %v275
    %v1079 = vunpack.c.l.b16 %v276
    %v1080 = vunpack.c.l.b16 %v277
    %v1081 = vunpack.c.l.b16 %v278
    %v1082 = vunpack.c.l.b16 %v279
    %v1083 = vunpack.c.l.b16 %v280
    %v1084 = vunpack.c.l.b16 %v281
    %v1085 = vunpack.c.l.b16 %v282
    %v1086 = vunpack.c.l.b16 %v283
    %v1087 = vunpack.c.l.b16 %v284
    %v1088 = vunpack.c.l.b16 %v285
    %v1089 = vunpack.c.l.b16 %v286
    %v1090 = vunpack.c.l.b16 %v287
    %v1091 = vunpack.c.l.b16 %v288
    %v1092 = vunpack.c.l.b16 %v289
    %v1093 = vunpack.c.l.b16 %v290
    %v1094 = vunpack.c.l.b16 %v291
    %v1095 = vunpack.c.l.b16 %v292
    %v1096 = vunpack.c.l.b16 %v293
    %v1097 = vunpack.c.l.b16 %v294
    %v1098 = vunpack.c.l.b16 %v295
    %v1099 = vunpack.c.l.b16 %v296
    %v1100 = vunpack.c.l.b16 %v297
    %v1101 = vunpack.c.l.b16 %v298
    %v1102 = vunpack.c.l.b16 %v299
    %v1103 = vunpack.c.l.b16 %v300
    %v1104 = vunpack.c.l.b16 %v301
    %v1105 = vunpack.c.l.b16 %v302
    %v1106 = vunpack.c.l.b16 %v303
    %v1107 = vunpack.c.l.b16 %v304
    %v1108 = vunpack.c.l.b16 %v305
    %v1109 = vpack.c.b16 %v1062, %v1061
    %v1110 = vpack.c.b16 %v1064, %v1063
    %v1111 = vpack.c.b16 %v1066, %v1065
    %v1112 = vpack.c.b16 %v1068, %v1067
    %v1113 = vpack.c.b16 %v1070, %v1069
    %v1114 = vpack.c.b16 %v1072, %v1071
    %v1115 = vpack.c.b16 %v1074, %v1073
    %v1116 = vpack.c.b16 %v1076, %v1075
    %v1117 = vpack.c.b16 %v1078, %v1077
    %v1118 = vpack.c.b16 %v1080, %v1079
    %v1119 = vpack.c.b16 %v1082, %v1081
    %v1120 = vpack.c.b16 %v1084, %v1083
    %v1121 = vpack.c.b16 %v1086, %v1085
    %v1122 = vpack.c.b16 %v1088, %v1087
    %v1123 = vpack.c.b16 %v1090, %v1089
    %v1124 = vpack.c.b16 %v1092, %v1091
    %v1125 = vpack.c.b16 %v1094, %v1093
    %v1126 = vpack.c.b16 %v1096, %v1095
    %v1127 = vpack.c.b16 %v1098, %v1097
    %v1128 = vpack.c.b16 %v1100, %v1099
    %v1129 = vpack.c.b16 %v1102, %v1101
    %v1130 = vpack.c.b16 %v1104, %v1103
    %v1131 = vpack.c.b16 %v1106, %v1105
    %v1132 = vpack.c.b16 %v1108, %v1107
    %1157 = vmatprep.subr.bf16.mxu0 0
    %1158 = vmatpush1.bf16.msra.mxu0 %v1109
    %1159 = vmatprep.subr.bf16.mxu0 0
    %1160 = vmatpush1.bf16.msra.mxu0 %v1110
    %1161 = vmatprep.subr.bf16.mxu0 0
    %1162 = vmatpush1.bf16.msra.mxu0 %v1111
    %1163 = vmatprep.subr.bf16.mxu0 0
    %1164 = vmatpush1.bf16.msra.mxu0 %v1112
    %1165 = vmatprep.subr.bf16.mxu0 0
    %1166 = vmatpush1.bf16.msra.mxu0 %v1113
    %1167 = vmatprep.subr.bf16.mxu0 0
    %1168 = vmatpush1.bf16.msra.mxu0 %v1114
    %1169 = vmatprep.subr.bf16.mxu0 0
    %1170 = vmatpush1.bf16.msra.mxu0 %v1115
    %1171 = vmatprep.subr.bf16.mxu0 0
    %1172 = vmatpush1.bf16.msra.mxu0 %v1116
    %1173 = vmatprep.subr.bf16.mxu0 0
    %1174 = vmatpush1.bf16.msra.mxu0 %v1117
    %1175 = vmatprep.subr.bf16.mxu0 0
    %1176 = vmatpush1.bf16.msra.mxu0 %v1118
    %1177 = vmatprep.subr.bf16.mxu0 0
    %1178 = vmatpush1.bf16.msra.mxu0 %v1119
    %1179 = vmatprep.subr.bf16.mxu0 0
    %1180 = vmatpush1.bf16.msra.mxu0 %v1120
    %1181 = vmatprep.subr.bf16.mxu0 0
    %1182 = vmatpush1.bf16.msra.mxu0 %v1121
    %1183 = vmatprep.subr.bf16.mxu0 0
    %1184 = vmatpush1.bf16.msra.mxu0 %v1122
    %1185 = vmatprep.subr.bf16.mxu0 0
    %1186 = vmatpush1.bf16.msra.mxu0 %v1123
    %1187 = vmatprep.subr.bf16.mxu0 0
    %1188 = vmatpush1.bf16.msra.mxu0 %v1124
    %1189 = vmatprep.mubr.bf16.mxu0 %v1006
    %1190 = vmatmul.mubr.bf16.gmra.mrb[0].mxu0 %v959
    %v1191 = vpop.f32.mrb[0].mxu0
    %v1192 = vadd.f32 %v1011, %v1191
    %v1193 = vpop.f32.mrb[0].mxu0
    %v1194 = vpop.f32.mrb[0].mxu0
    %v1195 = vadd.f32 %v1011, %v1194
    %v1196 = vpop.f32.mrb[0].mxu0
    %1197 = vdwg.mxu0
    %1198 = vmatprep.subr.bf16.mxu0 0
    %1199 = vmatpush1.bf16.msra.mxu0 %v1125
    %1200 = vmatprep.subr.bf16.mxu0 0
    %1201 = vmatpush1.bf16.msra.mxu0 %v1126
    %1202 = vmatprep.subr.bf16.mxu0 0
    %1203 = vmatpush1.bf16.msra.mxu0 %v1127
    %1204 = vmatprep.subr.bf16.mxu0 0
    %1205 = vmatpush1.bf16.msra.mxu0 %v1128
    %1206 = vmatprep.subr.bf16.mxu0 0
    %1207 = vmatpush1.bf16.msra.mxu0 %v1129
    %1208 = vmatprep.subr.bf16.mxu0 0
    %1209 = vmatpush1.bf16.msra.mxu0 %v1130
    %1210 = vmatprep.subr.bf16.mxu0 0
    %1211 = vmatpush1.bf16.msra.mxu0 %v1131
    %1212 = vmatprep.subr.bf16.mxu0 0
    %1213 = vmatpush1.bf16.msra.mxu0 %v1132
    %1214 = vmatprep.subr.bf16.mxu0 0
    %1215 = vmatpush1.bf16.msra.mxu0 0
    %1216 = vmatprep.subr.bf16.mxu0 0
    %1217 = vmatpush1.bf16.msra.mxu0 0
    %1218 = vmatprep.subr.bf16.mxu0 0
    %1219 = vmatpush1.bf16.msra.mxu0 0
    %1220 = vmatprep.subr.bf16.mxu0 0
    %1221 = vmatpush1.bf16.msra.mxu0 0
    %1222 = vmatprep.subr.bf16.mxu0 0
    %1223 = vmatpush1.bf16.msra.mxu0 0
    %1224 = vmatprep.subr.bf16.mxu0 0
    %1225 = vmatpush1.bf16.msra.mxu0 0
    %1226 = vmatprep.subr.bf16.mxu0 0
    %1227 = vmatpush1.bf16.msra.mxu0 0
    %1228 = vmatprep.subr.bf16.mxu0 0
    %1229 = vmatpush1.bf16.msra.mxu0 0
    %1230 = vmatprep.mubr.bf16.mxu0 0
    %1231 = vmatmul.mubr.bf16.gmra.mrb[0].mxu0 %v917
    %v1232 = vpop.f32.mrb[0].mxu0
    %v1233 = vadd.f32 %v1192, %v1232
    %v1234 = vpop.f32.mrb[0].mxu0
    %v1235 = vpop.f32.mrb[0].mxu0
    %v1236 = vadd.f32 %v1195, %v1235
    %v1237 = vpop.f32.mrb[0].mxu0
    %1238 = vdwg.mxu0
    %v1239 = vmax.f32 %v1233, 0.0
    %v1240 = vmax.f32 %v1236, 0.0
    %1241 = vmatprep.subr.bf16.mxu0 0
    %1242 = vmatpush1.bf16.msra.mxu0 %v917
    %1243 = vmatprep.subr.bf16.mxu0 0
    %1244 = vmatpush1.bf16.msra.mxu0 0
    %1245 = vmatprep.subr.bf16.mxu0 0
    %1246 = vmatpush1.bf16.msra.mxu0 0
    %1247 = vmatprep.subr.bf16.mxu0 0
    %1248 = vmatpush1.bf16.msra.mxu0 0
    %1249 = vmatprep.subr.bf16.mxu0 0
    %1250 = vmatpush1.bf16.msra.mxu0 0
    %1251 = vmatprep.subr.bf16.mxu0 0
    %1252 = vmatpush1.bf16.msra.mxu0 0
    %1253 = vmatprep.subr.bf16.mxu0 0
    %1254 = vmatpush1.bf16.msra.mxu0 0
    %1255 = vmatprep.subr.bf16.mxu0 0
    %1256 = vmatpush1.bf16.msra.mxu0 0
    %1257 = vmatprep.subr.bf16.mxu0 0
    %1258 = vmatpush1.bf16.msra.mxu0 0
    %1259 = vmatprep.subr.bf16.mxu0 0
    %1260 = vmatpush1.bf16.msra.mxu0 0
    %1261 = vmatprep.subr.bf16.mxu0 0
    %1262 = vmatpush1.bf16.msra.mxu0 0
    %1263 = vmatprep.subr.bf16.mxu0 0
    %1264 = vmatpush1.bf16.msra.mxu0 0
    %1265 = vmatprep.subr.bf16.mxu0 0
    %1266 = vmatpush1.bf16.msra.mxu0 0
    %1267 = vmatprep.subr.bf16.mxu0 0
    %1268 = vmatpush1.bf16.msra.mxu0 0
    %1269 = vmatprep.subr.bf16.mxu0 0
    %1270 = vmatpush1.bf16.msra.mxu0 0
    %1271 = vmatprep.subr.bf16.mxu0 0
    %1272 = vmatpush1.bf16.msra.mxu0 0
    %1273 = vmatprep.mubr.bf16.mxu0 0
    %1274 = vmatmul.mubr.bf16.gmra.mrb[0].mxu0 %v709
    %v1275 = vpop.f32.mrb[0].mxu0
    %v1276 = vadd.f32 0.0, %v1275
    %v1277 = vpop.f32.mrb[0].mxu0
    %v1278 = vpop.f32.mrb[0].mxu0
    %v1279 = vadd.f32 0.0, %v1278
    %v1280 = vpop.f32.mrb[0].mxu0
    %1281 = vmatprep.mubr.bf16.mxu0 0
    %1282 = vmatmul.mubr.bf16.gmra.mrb[0].mxu0 %v712
    %v1283 = vpop.f32.mrb[0].mxu0
    %v1284 = vadd.f32 0.0, %v1283
    %v1285 = vpop.f32.mrb[0].mxu0
    %v1286 = vpop.f32.mrb[0].mxu0
    %v1287 = vpop.f32.mrb[0].mxu0
    %1288 = vdwg.mxu0
    %v1289 = vpack.c.bf16 %v1279, %v1276
    %v1290 = vpack.c.bf16 %v1284, %v1284
    %v1292 = vlaneseq
    %v1293 = vshrl.u32 %v1292, 7
    %v1294 = vsub.s32 0, %v1293
    %v1295 = vrot.slane %v339, %v1294
    %v1329 = vunpack.c.l.b16 %v307
    %v1330 = vunpack.c.l.b16 %v308
    %v1331 = vunpack.c.l.b16 %v309
    %v1332 = vunpack.c.l.b16 %v310
    %v1333 = vunpack.c.l.b16 %v311
    %v1334 = vunpack.c.l.b16 %v312
    %v1335 = vunpack.c.l.b16 %v313
    %v1336 = vunpack.c.l.b16 %v314
    %v1337 = vunpack.c.l.b16 %v315
    %v1338 = vunpack.c.l.b16 %v316
    %v1339 = vunpack.c.l.b16 %v317
    %v1340 = vunpack.c.l.b16 %v318
    %v1341 = vunpack.c.l.b16 %v319
    %v1342 = vunpack.c.l.b16 %v320
    %v1343 = vunpack.c.l.b16 %v321
    %v1344 = vunpack.c.l.b16 %v322
    %v1345 = vunpack.c.l.b16 %v323
    %v1346 = vunpack.c.l.b16 %v324
    %v1347 = vunpack.c.l.b16 %v325
    %v1348 = vunpack.c.l.b16 %v326
    %v1349 = vunpack.c.l.b16 %v327
    %v1350 = vunpack.c.l.b16 %v328
    %v1351 = vunpack.c.l.b16 %v329
    %v1352 = vunpack.c.l.b16 %v330
    %v1353 = vunpack.c.l.b16 %v331
    %v1354 = vunpack.c.l.b16 %v332
    %v1355 = vunpack.c.l.b16 %v333
    %v1356 = vunpack.c.l.b16 %v334
    %v1357 = vunpack.c.l.b16 %v335
    %v1358 = vunpack.c.l.b16 %v336
    %v1359 = vunpack.c.l.b16 %v337
    %v1360 = vunpack.c.l.b16 %v338
    %v1361 = vpack.c.b16 %v1330, %v1329
    %v1362 = vpack.c.b16 %v1332, %v1331
    %v1363 = vpack.c.b16 %v1334, %v1333
    %v1364 = vpack.c.b16 %v1336, %v1335
    %v1365 = vpack.c.b16 %v1338, %v1337
    %v1366 = vpack.c.b16 %v1340, %v1339
    %v1367 = vpack.c.b16 %v1342, %v1341
    %v1368 = vpack.c.b16 %v1344, %v1343
    %v1369 = vpack.c.b16 %v1346, %v1345
    %v1370 = vpack.c.b16 %v1348, %v1347
    %v1371 = vpack.c.b16 %v1350, %v1349
    %v1372 = vpack.c.b16 %v1352, %v1351
    %v1373 = vpack.c.b16 %v1354, %v1353
    %v1374 = vpack.c.b16 %v1356, %v1355
    %v1375 = vpack.c.b16 %v1358, %v1357
    %v1376 = vpack.c.b16 %v1360, %v1359
    %1393 = vmatprep.subr.bf16.mxu0 0
    %1394 = vmatpush1.bf16.msra.mxu0 %v1361
    %1395 = vmatprep.subr.bf16.mxu0 0
    %1396 = vmatpush1.bf16.msra.mxu0 %v1362
    %1397 = vmatprep.subr.bf16.mxu0 0
    %1398 = vmatpush1.bf16.msra.mxu0 %v1363
    %1399 = vmatprep.subr.bf16.mxu0 0
    %1400 = vmatpush1.bf16.msra.mxu0 %v1364
    %1401 = vmatprep.subr.bf16.mxu0 0
    %1402 = vmatpush1.bf16.msra.mxu0 %v1365
    %1403 = vmatprep.subr.bf16.mxu0 0
    %1404 = vmatpush1.bf16.msra.mxu0 %v1366
    %1405 = vmatprep.subr.bf16.mxu0 0
    %1406 = vmatpush1.bf16.msra.mxu0 %v1367
    %1407 = vmatprep.subr.bf16.mxu0 0
    %1408 = vmatpush1.bf16.msra.mxu0 %v1368
    %1409 = vmatprep.subr.bf16.mxu0 0
    %1410 = vmatpush1.bf16.msra.mxu0 %v1369
    %1411 = vmatprep.subr.bf16.mxu0 0
    %1412 = vmatpush1.bf16.msra.mxu0 %v1370
    %1413 = vmatprep.subr.bf16.mxu0 0
    %1414 = vmatpush1.bf16.msra.mxu0 %v1371
    %1415 = vmatprep.subr.bf16.mxu0 0
    %1416 = vmatpush1.bf16.msra.mxu0 %v1372
    %1417 = vmatprep.subr.bf16.mxu0 0
    %1418 = vmatpush1.bf16.msra.mxu0 %v1373
    %1419 = vmatprep.subr.bf16.mxu0 0
    %1420 = vmatpush1.bf16.msra.mxu0 %v1374
    %1421 = vmatprep.subr.bf16.mxu0 0
    %1422 = vmatpush1.bf16.msra.mxu0 %v1375
    %1423 = vmatprep.subr.bf16.mxu0 0
    %1424 = vmatpush1.bf16.msra.mxu0 %v1376
    %1425 = vmatprep.mubr.bf16.mxu0 %v960
    %1426 = vmatmul.mubr.bf16.gmra.mrb[0].mxu0 %v1289
    %v1427 = vpop.f32.mrb[0].mxu0
    %v1428 = vadd.f32 %v1295, %v1427
    %v1429 = vpop.f32.mrb[0].mxu0
    %v1430 = vpop.f32.mrb[0].mxu0
    %v1431 = vadd.f32 %v1295, %v1430
    %v1432 = vpop.f32.mrb[0].mxu0
    %1433 = vmatprep.mubr.bf16.mxu0 %v961
    %1434 = vmatmul.mubr.bf16.gmra.mrb[0].mxu0 %v1290
    %v1435 = vpop.f32.mrb[0].mxu0
    %v1436 = vadd.f32 %v1295, %v1435
    %v1437 = vpop.f32.mrb[0].mxu0
    %v1438 = vpop.f32.mrb[0].mxu0
    %v1439 = vpop.f32.mrb[0].mxu0
    %1440 = vdwg.mxu0
    %v1441 = vmax.f32 %v1428, 0.0
    %v1442 = vmax.f32 %v1431, 0.0
    %v1443 = vmax.f32 %v1436, 0.0
    %v1444 = vpack.c.bf16 %v1240, %v1239
    %v1446 = vlaneseq
    %v1447 = vshrl.u32 %v1446, 7
    %v1448 = vsub.s32 0, %v1447
    %v1449 = vrot.slane %v356, %v1448
    %v1467 = vunpack.c.l.b16 %v340
    %v1468 = vunpack.c.l.b16 %v341
    %v1469 = vunpack.c.l.b16 %v342
    %v1470 = vunpack.c.l.b16 %v343
    %v1471 = vunpack.c.l.b16 %v344
    %v1472 = vunpack.c.l.b16 %v345
    %v1473 = vunpack.c.l.b16 %v346
    %v1474 = vunpack.c.l.b16 %v347
    %v1475 = vunpack.c.l.b16 %v348
    %v1476 = vunpack.c.l.b16 %v349
    %v1477 = vunpack.c.l.b16 %v350
    %v1478 = vunpack.c.l.b16 %v351
    %v1479 = vunpack.c.l.b16 %v352
    %v1480 = vunpack.c.l.b16 %v353
    %v1481 = vunpack.c.l.b16 %v354
    %v1482 = vunpack.c.l.b16 %v355
    %v1483 = vpack.c.b16 %v1468, %v1467
    %v1484 = vpack.c.b16 %v1470, %v1469
    %v1485 = vpack.c.b16 %v1472, %v1471
    %v1486 = vpack.c.b16 %v1474, %v1473
    %v1487 = vpack.c.b16 %v1476, %v1475
    %v1488 = vpack.c.b16 %v1478, %v1477
    %v1489 = vpack.c.b16 %v1480, %v1479
    %v1490 = vpack.c.b16 %v1482, %v1481
    %1499 = vmatprep.subr.bf16.mxu0 0
    %1500 = vmatpush1.bf16.msra.mxu0 %v1483
    %1501 = vmatprep.subr.bf16.mxu0 0
    %1502 = vmatpush1.bf16.msra.mxu0 %v1484
    %1503 = vmatprep.subr.bf16.mxu0 0
    %1504 = vmatpush1.bf16.msra.mxu0 %v1485
    %1505 = vmatprep.subr.bf16.mxu0 0
    %1506 = vmatpush1.bf16.msra.mxu0 %v1486
    %1507 = vmatprep.subr.bf16.mxu0 0
    %1508 = vmatpush1.bf16.msra.mxu0 %v1487
    %1509 = vmatprep.subr.bf16.mxu0 0
    %1510 = vmatpush1.bf16.msra.mxu0 %v1488
    %1511 = vmatprep.subr.bf16.mxu0 0
    %1512 = vmatpush1.bf16.msra.mxu0 %v1489
    %1513 = vmatprep.subr.bf16.mxu0 0
    %1514 = vmatpush1.bf16.msra.mxu0 %v1490
    %1515 = vmatprep.subr.bf16.mxu0 0
    %1516 = vmatpush1.bf16.msra.mxu0 0
    %1517 = vmatprep.subr.bf16.mxu0 0
    %1518 = vmatpush1.bf16.msra.mxu0 0
    %1519 = vmatprep.subr.bf16.mxu0 0
    %1520 = vmatpush1.bf16.msra.mxu0 0
    %1521 = vmatprep.subr.bf16.mxu0 0
    %1522 = vmatpush1.bf16.msra.mxu0 0
    %1523 = vmatprep.subr.bf16.mxu0 0
    %1524 = vmatpush1.bf16.msra.mxu0 0
    %1525 = vmatprep.subr.bf16.mxu0 0
    %1526 = vmatpush1.bf16.msra.mxu0 0
    %1527 = vmatprep.subr.bf16.mxu0 0
    %1528 = vmatpush1.bf16.msra.mxu0 0
    %1529 = vmatprep.subr.bf16.mxu0 0
    %1530 = vmatpush1.bf16.msra.mxu0 0
    %1531 = vmatprep.mubr.bf16.mxu0 0
    %1532 = vmatmul.mubr.bf16.gmra.mrb[0].mxu0 %v1444
    %v1533 = vpop.f32.mrb[0].mxu0
    %v1534 = vadd.f32 %v1449, %v1533
    %v1535 = vpop.f32.mrb[0].mxu0
    %v1536 = vpop.f32.mrb[0].mxu0
    %v1537 = vadd.f32 %v1449, %v1536
    %v1538 = vpop.f32.mrb[0].mxu0
    %1539 = vdwg.mxu0
    %v1540 = vxor.u32 %v1534, 2147483648
    %v1541 = vxor.u32 %v1537, 2147483648
    %v1542 = vmul.f32 %v1540, 1.442695
    %v1543 = vpow.pop %v1542
    %v1544 = vmul.f32 %v1541, 1.442695
    %v1545 = vpow.pop %v1544
    %v1546 = vadd.f32 %v1543, 1.0
    %v1547 = vadd.f32 %v1545, 1.0
    %v1548 = vrcp.pop %v1546
    %v1549 = vmul.f32 1.0, %v1548
    %v1550 = vrcp.pop %v1547
    %v1551 = vmul.f32 1.0, %v1550
    %1552 = vst [vmem:[#allocation16] sm:$0xff] %v1549
    %1553 = vst [vmem:[#allocation16 + $0x8] sm:$0xff] %v1551
    %1554 = vst [vmem:[#allocation17] sm:$0xff] %v1441
    %1555 = vst [vmem:[#allocation17 + $0x8] sm:$0xff] %v1442
    %1556 = vst [vmem:[#allocation17 + $0x10] sm:$0xff] %v1443
    // Predicated region
    $region94: #{tpu_custom_call.1} parent=1 // pred_check
      _
    $region95: #{tpu_custom_call.1} parent=1 // pred_check_branch
      %1558 = sbr.rel (0) target = $region97
    $region96: #{tpu_custom_call.1} parent=1 // pred_region
      %s1560 = ssub.s32 256, 256
      %1561 = vsyncadd [#allocation4], %s1560
      %s1562 = sshll.u32 [#allocation16], 4
      %s1563 = int_to_ptr.vmem [resolvable:$true] %s1562
      %1568 = dma.vmem_to_hbm [thread:$0]  %s1563, 256, %s15, [#allocation4], 128, 128, 8
    $region97: #{tpu_custom_call.1} parent=1 // pred_fallthru
      _
    // Predicated region
    $region98: #{tpu_custom_call.1} parent=1 // pred_check
      _
    $region99: #{tpu_custom_call.1} parent=1 // pred_check_branch
      %1570 = sbr.rel (0) target = $region101
    $region100: #{tpu_custom_call.1} parent=1 // pred_region
      %s1572 = ssub.s32 384, 384
      %1573 = vsyncadd [#allocation18], %s1572
      %s1574 = sshll.u32 [#allocation17], 4
      %s1575 = int_to_ptr.vmem [resolvable:$true] %s1574
      %1580 = dma.vmem_to_hbm [thread:$0]  %s1575, 384, %s16, [#allocation18], 128, 128, 8
    $region101: #{tpu_custom_call.1} parent=1 // pred_fallthru
      _
    // Predicated region
    $region102: #{tpu_custom_call.1} parent=1 // pred_check
      _
    $region103: #{tpu_custom_call.1} parent=1 // pred_check_branch
      %1582 = sbr.rel (0) target = $region105
    $region104: #{tpu_custom_call.1} parent=1 // pred_region
      %1583 = dma.done [#allocation4], 256
    $region105: #{tpu_custom_call.1} parent=1 // pred_fallthru
      _
    // Predicated region
    $region106: #{tpu_custom_call.1} parent=1 // pred_check
      _
    $region107: #{tpu_custom_call.1} parent=1 // pred_check_branch
      %1585 = sbr.rel (0) target = $region109
    $region108: #{tpu_custom_call.1} parent=1 // pred_region
      %1586 = dma.done [#allocation18], 384
    $region109: #{tpu_custom_call.1} parent=1 // pred_fallthru
      _
    %1587 = vsyncpa [#allocation3], 1
    %1588 = vsyncpa [#allocation6], 1
    %1589 = vsyncpa [#allocation9], 1
    %1590 = vsyncpa [#allocation12], 1
    %1591 = vsyncpa [#allocation15], 1
    %1592 = vsyncpa [#allocation4], 1
    %1593 = vsyncpa [#allocation18], 1

</llo_original>
